<compile_context>
chip_gen: v6e
topology: v6e:2x2x1
jax: 0.10.0
libtpu: 0.0.40
codegen_flags: <defaults>
</compile_context>

<pallas_src>
import math
import functools

import jax
import jax.numpy as jnp
from jax.experimental import pallas as pl
from jax.experimental.pallas import tpu as pltpu

EXPANSION = 4


def _round_up(v, m):
    return -(-v // m) * m


# ----------------------------------------------------------------------------
# Fused Bottleneck kernel (one image per grid step)
# ----------------------------------------------------------------------------

def _bottleneck_kernel(x_ref, w1_ref, w2_ref, w3_ref, *rest,
                       stride, out_h, out_w, has_proj):
    """Whole Bottleneck block for one image.

    stride == 1:
      x_ref : (H, W, Cin) bf16, unpadded NHWC image
      w1_ref: (Cin, P) bf16, or (Cin, Cout+P) = [wsc | w1] when has_proj
    stride  > 1:
      x_ref : (s*s, Hq, Wq, Cin) bf16, zero-padded + phase-split input
      wsc_ref (optional): (Cin, Cout) bf16 projection shortcut
    w2_ref : (9*P, P) bf16, 3x3 taps flattened tap-major along K
    w3_ref : (P, Cout) bf16
    o_ref  : (out_h, out_w, Cout) bf16
    h1q_ref: (n_phase, Hs, Ws, P) f32 VMEM scratch holding the zero-padded,
             phase-split ReLU(conv1(x)).
    """
    s = stride
    if has_proj and s > 1:
        wsc_ref, o_ref, h1q_ref = rest
    else:
        o_ref, h1q_ref = rest
    fuse_proj = has_proj and s == 1

    P = h1q_ref.shape[-1]
    Cout = w3_ref.shape[1]

    # ---- conv1: 1x1 + ReLU (one fused matmul; + projection when stride==1) --
    proj_res = None
    if s == 1:
        H, W, Cin = x_ref.shape
        x_flat = x_ref[...].reshape(H * W, Cin)                     # bf16
        t1 = jnp.dot(x_flat, w1_ref[...], preferred_element_type=jnp.float32)
        if fuse_proj:
            # w1_ref = [wsc | w1]: one pass of x through the MXU gives both the
            # projection residual and the conv1 pre-activation.
            proj_res = t1[:, :Cout]
            t1 = t1[:, Cout:]
        h1 = jnp.maximum(t1, 0.0).reshape(H, W, P)
        # Zero-padded (pad=1) ReLU(conv1) lives in a small VMEM scratch; the
        # pad is materialized here instead of on the host (no HBM pad pass).
        h1q_ref[...] = jnp.zeros(h1q_ref.shape, h1q_ref.dtype)
        h1q_ref[0, 1:H + 1, 1:W + 1, :] = h1.astype(h1q_ref.dtype)
    else:
        nph, Hq, Wq, Cin = x_ref.shape
        x_flat = x_ref[...].reshape(nph * Hq * Wq, Cin)             # bf16
        t1 = jnp.dot(x_flat, w1_ref[...], preferred_element_type=jnp.float32)
        # Running conv1 on the zero-padded input gives the padded
        # ReLU(conv1(x)) for free (bias-free conv, ReLU(0) == 0).
        h1q_ref[...] = jnp.maximum(t1, 0.0).reshape(
            nph, Hq, Wq, P).astype(h1q_ref.dtype)

    # ---- conv2: 3x3 stride-s as ONE matmul with K = 9P (MXU-internal acc) ---
    wins = []
    for dy in range(3):
        for dx in range(3):
            ph = (dy % s) * s + (dx % s)
            oy, ox = dy // s, dx // s
            wins.append(h1q_ref[ph, oy:oy + out_h, ox:ox + out_w, :])
    a = jnp.concatenate(wins, axis=-1).reshape(out_h * out_w, 9 * P)
    h2 = jnp.maximum(
        jnp.dot(a.astype(jnp.bfloat16), w2_ref[...],
                preferred_element_type=jnp.float32), 0.0)

    # ---- conv3: 1x1 + residual + ReLU (f32 epilogue, bf16 lane-dense store) --
    out = jnp.dot(h2.astype(jnp.bfloat16), w3_ref[...],
                  preferred_element_type=jnp.float32)
    if proj_res is not None:
        res = proj_res
    elif s == 1:
        # Identity shortcut (Cin == Cout): re-read x late (cheap VMEM vld).
        res = x_ref[...].reshape(out_h * out_w, -1).astype(jnp.float32)
    else:
        # Strided shortcut sampling = the (1,1)-tap window of the padded input.
        ph_sc, off_sc = (1 % s) * s + (1 % s), 1 // s
        sc = x_ref[ph_sc, off_sc:off_sc + out_h, off_sc:off_sc + out_w, :]
        sc = sc.reshape(out_h * out_w, -1)
        if has_proj:
            res = jnp.dot(sc, wsc_ref[...], preferred_element_type=jnp.float32)
        else:
            res = sc.astype(jnp.float32)
    out = jnp.maximum(out + res, 0.0)
    o_ref[...] = out.reshape(out_h, out_w, Cout).astype(o_ref.dtype)


# ----------------------------------------------------------------------------
# Host wrappers
# ----------------------------------------------------------------------------

def bottleneck_forward_nhwc(x_nhwc, params, stride=1):
    """NHWC-in / NHWC-out bf16 core: one fused pallas_call per block."""
    x = x_nhwc.astype(jnp.bfloat16)
    N, H, W, Cin = x.shape
    P = params["w1"].shape[1]
    Cout = params["w3"].shape[1]
    s = int(stride)
    has_proj = "wsc" in params
    if s != 1 or Cin != Cout:
        assert has_proj, "stride/shape change requires a projection shortcut"

    out_h = (H - 1) // s + 1          # = (H + 2*pad - 3)//s + 1, pad=1
    out_w = (W - 1) // s + 1

    # 3x3 weights, taps flattened tap-major along K: (3,3,P,P) -> (9P, P).
    w2 = params["w2"].reshape(9 * P, P).astype(jnp.bfloat16)
    w3 = params["w3"].astype(jnp.bfloat16)

    if s == 1:
        # No host-side pad / relayout: the kernel builds the padded conv1
        # output in a VMEM scratch instead (single HBM read of x, in bf16).
        if has_proj:
            w1 = jnp.concatenate([params["wsc"], params["w1"]],
                                 axis=1).astype(jnp.bfloat16)
        else:
            w1 = params["w1"].astype(jnp.bfloat16)
        xin = x
        n_phase, Hs, Ws = 1, H + 2, _round_up(W + 2, 8)
        in_specs = [
            pl.BlockSpec((None, H, W, Cin), lambda n: (n, 0, 0, 0)),
            pl.BlockSpec(w1.shape, lambda n: (0, 0)),
            pl.BlockSpec(w2.shape, lambda n: (0, 0)),
            pl.BlockSpec(w3.shape, lambda n: (0, 0)),
        ]
        args = [xin, w1, w2, w3]
    else:
        # stride > 1: bf16 zero-pad + phase split ("space-to-depth by stride")
        # so every strided 3x3 tap becomes a unit-stride window in-kernel.
        w1 = params["w1"].astype(jnp.bfloat16)
        xp = jnp.pad(x, ((0, 0), (1, 1), (1, 1), (0, 0)))
        Hp, Wp = H + 2, W + 2
        Hq, Wq = -(-Hp // s), -(-Wp // s)
        xp = jnp.pad(xp, ((0, 0), (0, Hq * s - Hp), (0, Wq * s - Wp), (0, 0)))
        xq = xp.reshape(N, Hq, s, Wq, s, Cin).transpose(0, 2, 4, 1, 3, 5)
        xq = xq.reshape(N, s * s, Hq, Wq, Cin)
        Wq_pad = _round_up(Wq, 8)                 # 8-align the sublane dim
        if Wq_pad != Wq:
            xq = jnp.pad(xq, ((0, 0), (0, 0), (0, 0), (0, Wq_pad - Wq), (0, 0)))
            Wq = Wq_pad
        xin = xq
        n_phase, Hs, Ws = s * s, Hq, Wq
        in_specs = [
            pl.BlockSpec((None, s * s, Hq, Wq, Cin), lambda n: (n, 0, 0, 0, 0)),
            pl.BlockSpec(w1.shape, lambda n: (0, 0)),
            pl.BlockSpec(w2.shape, lambda n: (0, 0)),
            pl.BlockSpec(w3.shape, lambda n: (0, 0)),
        ]
        args = [xin, w1, w2, w3]
        if has_proj:
            wsc = params["wsc"].astype(jnp.bfloat16)
            in_specs.append(pl.BlockSpec(wsc.shape, lambda n: (0, 0)))
            args.append(wsc)

    kernel = functools.partial(_bottleneck_kernel, stride=s,
                               out_h=out_h, out_w=out_w, has_proj=has_proj)

    return pl.pallas_call(
        kernel,
        out_shape=jax.ShapeDtypeStruct((N, out_h, out_w, Cout), jnp.bfloat16),
        grid=(N,),
        in_specs=in_specs,
        out_specs=pl.BlockSpec((None, out_h, out_w, Cout),
                               lambda n: (n, 0, 0, 0)),
        scratch_shapes=[pltpu.VMEM((n_phase, Hs, Ws, P), jnp.float32)],
        compiler_params=pltpu.CompilerParams(
            dimension_semantics=("parallel",),
            vmem_limit_bytes=64 * 1024 * 1024),
    )(*args)


def bottleneck_forward(x_nchw, params, stride=1):
    """NCHW-in / NCHW-out wrapper matching the PyTorch module's forward()."""
    x = jnp.transpose(x_nchw, (0, 2, 3, 1))
    y = bottleneck_forward_nhwc(x, params, stride)
    return jnp.transpose(y, (0, 3, 1, 2))


# ----------------------------------------------------------------------------
# Parameters & plain-JAX reference (correctness check)
# ----------------------------------------------------------------------------

def make_bottleneck_params(key, in_planes, planes, stride):
    cout = EXPANSION * planes
    k1, k2, k3, k4 = jax.random.split(key, 4)
    p = {
        "w1": jax.random.normal(k1, (in_planes, planes), jnp.float32)
              / math.sqrt(in_planes),
        "w2": jax.random.normal(k2, (3, 3, planes, planes), jnp.float32)
              / math.sqrt(9 * planes),
        "w3": jax.random.normal(k3, (planes, cout), jnp.float32)
              / math.sqrt(planes),
    }
    if stride != 1 or in_planes != cout:
        p["wsc"] = jax.random.normal(k4, (in_planes, cout), jnp.float32) \
                   / math.sqrt(in_planes)
    return p


def bottleneck_reference(x_nchw, params, stride=1):
    x = jnp.transpose(x_nchw, (0, 2, 3, 1)).astype(jnp.float32)
    Cin = x.shape[-1]
    P = params["w1"].shape[1]
    Cout = params["w3"].shape[1]
    dn = ("NHWC", "HWIO", "NHWC")
    h = jax.nn.relu(jax.lax.conv_general_dilated(
        x, params["w1"].reshape(1, 1, Cin, P), (1, 1), "VALID",
        dimension_numbers=dn))
    h = jax.nn.relu(jax.lax.conv_general_dilated(
        h, params["w2"], (stride, stride), ((1, 1), (1, 1)),
        dimension_numbers=dn))
    h = jax.lax.conv_general_dilated(
        h, params["w3"].reshape(1, 1, P, Cout), (1, 1), "VALID",
        dimension_numbers=dn)
    if "wsc" in params:
        sc = jax.lax.conv_general_dilated(
            x, params["wsc"].reshape(1, 1, Cin, Cout), (stride, stride),
            "VALID", dimension_numbers=dn)
    else:
        sc = x
    return jnp.transpose(jax.nn.relu(h + sc), (0, 3, 1, 2))


# ----------------------------------------------------------------------------
if __name__ == "__main__":
    key = jax.random.PRNGKey(0)
    kx1, kx2, kp1, kp2 = jax.random.split(key, 4)

    # Config A: identity shortcut (stride=1, in_planes == 4*planes), Cout=128.
    x1 = jax.random.normal(kx1, (2, 128, 16, 16), jnp.float32)      # NCHW
    p1 = make_bottleneck_params(kp1, in_planes=128, planes=32, stride=1)
    y1 = jax.jit(functools.partial(bottleneck_forward, stride=1))(x1, p1)
    r1 = bottleneck_reference(x1, p1, stride=1)

    # Config B: projection shortcut, stride=2 (planes chosen so Cout=128,
    # i.e. a lane-dense output store).
    x2 = jax.random.normal(kx2, (2, 64, 16, 16), jnp.float32)       # NCHW
    p2 = make_bottleneck_params(kp2, in_planes=64, planes=32, stride=2)
    y2 = jax.jit(functools.partial(bottleneck_forward, stride=2))(x2, p2)
    r2 = bottleneck_reference(x2, p2, stride=2)

    jax.block_until_ready((y1, y2))

    for y, r in ((y1, r1), (y2, r2)):
        assert y.shape == r.shape, (y.shape, r.shape)
        yf = y.astype(jnp.float32)
        assert bool(jnp.all(jnp.isfinite(yf)))
        rel = float(jnp.max(jnp.abs(yf - r)) / (jnp.max(jnp.abs(r)) + 1e-6))
        assert rel < 5e-2, rel      # bf16 activations/weights vs f32 reference

    print("KERNEL_OK")
</pallas_src>

<mosaic_0001>
module attributes {stable_mosaic.version = 11 : i64} {
  func.func @_bottleneck_kernel(%arg0: i32, %arg1: memref<1x16x16x128xbf16, #tpu.memory_space<vmem>>, %arg2: memref<128x32xbf16, #tpu.memory_space<vmem>>, %arg3: memref<288x32xbf16, #tpu.memory_space<vmem>>, %arg4: memref<32x128xbf16, #tpu.memory_space<vmem>>, %arg5: memref<1x16x16x128xbf16, #tpu.memory_space<vmem>>, %arg6: memref<1x18x24x32xf32, #tpu.memory_space<vmem>>) attributes {dimension_semantics = [#tpu.dimension_semantics<parallel>], iteration_bounds = array<i64: 2>, scalar_prefetch = 0 : i64, scratch_operands = 1 : i64, tpu.core_type = #tpu.core_type<tc>, window_params = [{transform_indices = @transform_0, window_bounds = array<i64: 1, 16, 16, 128>}, {pipeline_mode = #tpu.pipeline_mode<synchronous>, transform_indices = @transform_1, window_bounds = array<i64: 128, 32>}, {pipeline_mode = #tpu.pipeline_mode<synchronous>, transform_indices = @transform_2, window_bounds = array<i64: 288, 32>}, {pipeline_mode = #tpu.pipeline_mode<synchronous>, transform_indices = @transform_3, window_bounds = array<i64: 32, 128>}, {transform_indices = @transform_4, window_bounds = array<i64: 1, 16, 16, 128>}]} {
    %c0 = arith.constant 0 : index
    %c0_0 = arith.constant 0 : index
    %c0_1 = arith.constant 0 : index
    %c0_2 = arith.constant 0 : index
    %0 = vector.load %arg1[%c0, %c0_0, %c0_1, %c0_2] : memref<1x16x16x128xbf16, #tpu.memory_space<vmem>>, vector<1x16x16x128xbf16>
    %1 = vector.shape_cast %0 : vector<1x16x16x128xbf16> to vector<16x16x128xbf16>
    %2 = vector.shape_cast %1 : vector<16x16x128xbf16> to vector<256x128xbf16>
    %c0_3 = arith.constant 0 : index
    %c0_4 = arith.constant 0 : index
    %3 = vector.load %arg2[%c0_3, %c0_4] : memref<128x32xbf16, #tpu.memory_space<vmem>>, vector<128x32xbf16>
    %cst = arith.constant dense<0.000000e+00> : vector<256x32xf32>
    %4 = tpu.matmul %2, %3, %cst {dimension_numbers = #tpu.dot_dimension_numbers<[1], [0], [0], [1], [0, 0, 1, 1], [], []>} : vector<256x128xbf16>, vector<128x32xbf16>, vector<256x32xf32> -> vector<256x32xf32>
    %cst_5 = arith.constant 0.000000e+00 : f32
    %5 = vector.broadcast %cst_5 : f32 to vector<256x32xf32>
    %6 = arith.maximumf %4, %5 : vector<256x32xf32>
    %7 = vector.shape_cast %6 : vector<256x32xf32> to vector<16x16x32xf32>
    %cst_6 = arith.constant 0.000000e+00 : f32
    %8 = vector.broadcast %cst_6 : f32 to vector<1x18x24x32xf32>
    %c0_7 = arith.constant 0 : index
    %c0_8 = arith.constant 0 : index
    %c0_9 = arith.constant 0 : index
    %c0_10 = arith.constant 0 : index
    %9 = vector.load %arg6[%c0_7, %c0_8, %c0_9, %c0_10] : memref<1x18x24x32xf32, #tpu.memory_space<vmem>>, vector<1x18x24x32xf32>
    tpu.vector_store %arg6[%c0_7, %c0_8, %c0_9, %c0_10], %8 {strides = array<i32>} : memref<1x18x24x32xf32, #tpu.memory_space<vmem>>, vector<1x18x24x32xf32>,
    %c0_11 = arith.constant 0 : index
    %c1 = arith.constant 1 : index
    %c1_12 = arith.constant 1 : index
    %c0_13 = arith.constant 0 : index
    %10 = vector.load %arg6[%c0_11, %c1, %c1_12, %c0_13] : memref<1x18x24x32xf32, #tpu.memory_space<vmem>>, vector<1x16x16x32xf32>
    %11 = vector.shape_cast %10 : vector<1x16x16x32xf32> to vector<16x16x32xf32>
    %12 = vector.shape_cast %7 : vector<16x16x32xf32> to vector<1x16x16x32xf32>
    tpu.vector_store %arg6[%c0_11, %c1, %c1_12, %c0_13], %12 {strides = array<i32>} : memref<1x18x24x32xf32, #tpu.memory_space<vmem>>, vector<1x16x16x32xf32>,
    %c0_14 = arith.constant 0 : index
    %c0_15 = arith.constant 0 : index
    %c0_16 = arith.constant 0 : index
    %c0_17 = arith.constant 0 : index
    %13 = vector.load %arg6[%c0_14, %c0_15, %c0_16, %c0_17] : memref<1x18x24x32xf32, #tpu.memory_space<vmem>>, vector<1x16x16x32xf32>
    %14 = vector.shape_cast %13 : vector<1x16x16x32xf32> to vector<16x16x32xf32>
    %c0_18 = arith.constant 0 : index
    %c0_19 = arith.constant 0 : index
    %c1_20 = arith.constant 1 : index
    %c0_21 = arith.constant 0 : index
    %15 = vector.load %arg6[%c0_18, %c0_19, %c1_20, %c0_21] : memref<1x18x24x32xf32, #tpu.memory_space<vmem>>, vector<1x16x16x32xf32>
    %16 = vector.shape_cast %15 : vector<1x16x16x32xf32> to vector<16x16x32xf32>
    %c0_22 = arith.constant 0 : index
    %c0_23 = arith.constant 0 : index
    %c2 = arith.constant 2 : index
    %c0_24 = arith.constant 0 : index
    %17 = vector.load %arg6[%c0_22, %c0_23, %c2, %c0_24] : memref<1x18x24x32xf32, #tpu.memory_space<vmem>>, vector<1x16x16x32xf32>
    %18 = vector.shape_cast %17 : vector<1x16x16x32xf32> to vector<16x16x32xf32>
    %c0_25 = arith.constant 0 : index
    %c1_26 = arith.constant 1 : index
    %c0_27 = arith.constant 0 : index
    %c0_28 = arith.constant 0 : index
    %19 = vector.load %arg6[%c0_25, %c1_26, %c0_27, %c0_28] : memref<1x18x24x32xf32, #tpu.memory_space<vmem>>, vector<1x16x16x32xf32>
    %20 = vector.shape_cast %19 : vector<1x16x16x32xf32> to vector<16x16x32xf32>
    %c0_29 = arith.constant 0 : index
    %c1_30 = arith.constant 1 : index
    %c1_31 = arith.constant 1 : index
    %c0_32 = arith.constant 0 : index
    %21 = vector.load %arg6[%c0_29, %c1_30, %c1_31, %c0_32] : memref<1x18x24x32xf32, #tpu.memory_space<vmem>>, vector<1x16x16x32xf32>
    %22 = vector.shape_cast %21 : vector<1x16x16x32xf32> to vector<16x16x32xf32>
    %c0_33 = arith.constant 0 : index
    %c1_34 = arith.constant 1 : index
    %c2_35 = arith.constant 2 : index
    %c0_36 = arith.constant 0 : index
    %23 = vector.load %arg6[%c0_33, %c1_34, %c2_35, %c0_36] : memref<1x18x24x32xf32, #tpu.memory_space<vmem>>, vector<1x16x16x32xf32>
    %24 = vector.shape_cast %23 : vector<1x16x16x32xf32> to vector<16x16x32xf32>
    %c0_37 = arith.constant 0 : index
    %c2_38 = arith.constant 2 : index
    %c0_39 = arith.constant 0 : index
    %c0_40 = arith.constant 0 : index
    %25 = vector.load %arg6[%c0_37, %c2_38, %c0_39, %c0_40] : memref<1x18x24x32xf32, #tpu.memory_space<vmem>>, vector<1x16x16x32xf32>
    %26 = vector.shape_cast %25 : vector<1x16x16x32xf32> to vector<16x16x32xf32>
    %c0_41 = arith.constant 0 : index
    %c2_42 = arith.constant 2 : index
    %c1_43 = arith.constant 1 : index
    %c0_44 = arith.constant 0 : index
    %27 = vector.load %arg6[%c0_41, %c2_42, %c1_43, %c0_44] : memref<1x18x24x32xf32, #tpu.memory_space<vmem>>, vector<1x16x16x32xf32>
    %28 = vector.shape_cast %27 : vector<1x16x16x32xf32> to vector<16x16x32xf32>
    %c0_45 = arith.constant 0 : index
    %c2_46 = arith.constant 2 : index
    %c2_47 = arith.constant 2 : index
    %c0_48 = arith.constant 0 : index
    %29 = vector.load %arg6[%c0_45, %c2_46, %c2_47, %c0_48] : memref<1x18x24x32xf32, #tpu.memory_space<vmem>>, vector<1x16x16x32xf32>
    %30 = vector.shape_cast %29 : vector<1x16x16x32xf32> to vector<16x16x32xf32>
    %31 = tpu.concatenate %14, %16, %18, %20, %22, %24, %26, %28, %30 in 2 : vector<16x16x32xf32>, vector<16x16x32xf32>, vector<16x16x32xf32>, vector<16x16x32xf32>, vector<16x16x32xf32>, vector<16x16x32xf32>, vector<16x16x32xf32>, vector<16x16x32xf32>, vector<16x16x32xf32> -> vector<16x16x288xf32>
    %32 = vector.shape_cast %31 : vector<16x16x288xf32> to vector<256x288xf32>
    %33 = arith.truncf %32 : vector<256x288xf32> to vector<256x288xbf16>
    %c0_49 = arith.constant 0 : index
    %c0_50 = arith.constant 0 : index
    %34 = vector.load %arg3[%c0_49, %c0_50] : memref<288x32xbf16, #tpu.memory_space<vmem>>, vector<288x32xbf16>
    %cst_51 = arith.constant dense<0.000000e+00> : vector<256x32xf32>
    %35 = tpu.matmul %33, %34, %cst_51 {dimension_numbers = #tpu.dot_dimension_numbers<[1], [0], [0], [1], [0, 0, 1, 1], [], []>} : vector<256x288xbf16>, vector<288x32xbf16>, vector<256x32xf32> -> vector<256x32xf32>
    %cst_52 = arith.constant 0.000000e+00 : f32
    %36 = vector.broadcast %cst_52 : f32 to vector<256x32xf32>
    %37 = arith.maximumf %35, %36 : vector<256x32xf32>
    %38 = arith.truncf %37 : vector<256x32xf32> to vector<256x32xbf16>
    %c0_53 = arith.constant 0 : index
    %c0_54 = arith.constant 0 : index
    %39 = vector.load %arg4[%c0_53, %c0_54] : memref<32x128xbf16, #tpu.memory_space<vmem>>, vector<32x128xbf16>
    %cst_55 = arith.constant dense<0.000000e+00> : vector<256x128xf32>
    %40 = tpu.matmul %38, %39, %cst_55 {dimension_numbers = #tpu.dot_dimension_numbers<[1], [0], [0], [1], [0, 0, 1, 1], [], []>} : vector<256x32xbf16>, vector<32x128xbf16>, vector<256x128xf32> -> vector<256x128xf32>
    %c0_56 = arith.constant 0 : index
    %c0_57 = arith.constant 0 : index
    %c0_58 = arith.constant 0 : index
    %c0_59 = arith.constant 0 : index
    %41 = vector.load %arg1[%c0_56, %c0_57, %c0_58, %c0_59] : memref<1x16x16x128xbf16, #tpu.memory_space<vmem>>, vector<1x16x16x128xbf16>
    %42 = vector.shape_cast %41 : vector<1x16x16x128xbf16> to vector<16x16x128xbf16>
    %43 = vector.shape_cast %42 : vector<16x16x128xbf16> to vector<256x128xbf16>
    %44 = arith.extf %43 : vector<256x128xbf16> to vector<256x128xf32>
    %45 = arith.addf %40, %44 : vector<256x128xf32>
    %cst_60 = arith.constant 0.000000e+00 : f32
    %46 = vector.broadcast %cst_60 : f32 to vector<256x128xf32>
    %47 = arith.maximumf %45, %46 : vector<256x128xf32>
    %48 = vector.shape_cast %47 : vector<256x128xf32> to vector<16x16x128xf32>
    %49 = arith.truncf %48 : vector<16x16x128xf32> to vector<16x16x128xbf16>
    %c0_61 = arith.constant 0 : index
    %c0_62 = arith.constant 0 : index
    %c0_63 = arith.constant 0 : index
    %c0_64 = arith.constant 0 : index
    %50 = vector.load %arg5[%c0_61, %c0_62, %c0_63, %c0_64] : memref<1x16x16x128xbf16, #tpu.memory_space<vmem>>, vector<1x16x16x128xbf16>
    %51 = vector.shape_cast %50 : vector<1x16x16x128xbf16> to vector<16x16x128xbf16>
    %52 = vector.shape_cast %49 : vector<16x16x128xbf16> to vector<1x16x16x128xbf16>
    tpu.vector_store %arg5[%c0_61, %c0_62, %c0_63, %c0_64], %52 {strides = array<i32>} : memref<1x16x16x128xbf16, #tpu.memory_space<vmem>>, vector<1x16x16x128xbf16>,
    return
  }
  func.func @transform_0(%arg0: i32) -> (i32, i32, i32, i32) {
    %c0_i32 = arith.constant 0 : i32
    %c0_i32_0 = arith.constant 0 : i32
    %c0_i32_1 = arith.constant 0 : i32
    %c0_i32_2 = arith.constant 0 : i32
    return %arg0, %c0_i32, %c0_i32_0, %c0_i32_1 : i32, i32, i32, i32
  }
  func.func @transform_1(%arg0: i32) -> (i32, i32) {
    %c0_i32 = arith.constant 0 : i32
    %c0_i32_0 = arith.constant 0 : i32
    %c0_i32_1 = arith.constant 0 : i32
    return %c0_i32, %c0_i32_0 : i32, i32
  }
  func.func @transform_2(%arg0: i32) -> (i32, i32) {
    %c0_i32 = arith.constant 0 : i32
    %c0_i32_0 = arith.constant 0 : i32
    %c0_i32_1 = arith.constant 0 : i32
    return %c0_i32, %c0_i32_0 : i32, i32
  }
  func.func @transform_3(%arg0: i32) -> (i32, i32) {
    %c0_i32 = arith.constant 0 : i32
    %c0_i32_0 = arith.constant 0 : i32
    %c0_i32_1 = arith.constant 0 : i32
    return %c0_i32, %c0_i32_0 : i32, i32
  }
  func.func @transform_4(%arg0: i32) -> (i32, i32, i32, i32) {
    %c0_i32 = arith.constant 0 : i32
    %c0_i32_0 = arith.constant 0 : i32
    %c0_i32_1 = arith.constant 0 : i32
    %c0_i32_2 = arith.constant 0 : i32
    return %arg0, %c0_i32, %c0_i32_0, %c0_i32_1 : i32, i32, i32, i32
  }
}

</mosaic_0001>

<llo_original>
// kernel: bottleneck_forward.1
$region0: #{bottleneck_forward.1}
  #allocation0 [shape = 'u32[]', space=smem, size = 0x4, offset = 0x4, fixed_abs, tag = 'smem constant byte address 0x4 - core index']
  #allocation1 [shape = 'u32[144,128]{1,0:T(1,128)}', space=vmem, size = 0x12000, scoped, tag = 'internal scratch']
  #allocation2 [shape = 'f32[1,18,24,32]{3,2,1,0:T(8,128)}', space=vmem, size = 0x36000, scoped, tag = 'scratch operand']
  %s0 = inlined_call_operand.vmem [shape: bf16[2,16,16,128], index: 0, kind: input, shape index: {}]
  %s1 = inlined_call_operand.vmem [shape: bf16[128,32], index: 1, kind: input, shape index: {}]
  %s2 = inlined_call_operand.vmem [shape: bf16[288,32], index: 2, kind: input, shape index: {}]
  %s3 = inlined_call_operand.vmem [shape: bf16[32,128], index: 3, kind: input, shape index: {}]
  %s4 = inlined_call_operand.hbm [shape: bf16[2,16,16,128], index: 4, kind: output, shape index: {}]
  %s5 = sld [smem:[#allocation0]]
  $region49: #{bottleneck_forward.1} parent=0
    _
  %s7 = ssub.s32 1, %s5
  %s8 = scalar_select 0, %s7, %s5
  $region1: #{bottleneck_forward.1} parent=0
    #allocation3 [shape = 'u8[131072]{0}', space=vmem, size = 0x20000, scoped, tag = 'output window, operand 0']
    #allocation4 [shape = 's32[2]{0}', space=sflag, size = 0x8, scoped, tag = 'scoped memory for bottleneck_forward.1']
    %9 = vsyncpa [#allocation4], 0
    %s10 = scalar_lea.sflag [#allocation4], 1
    %11 = vsyncpa %s10, 0
    loop: start=0, step=1, limit=4
    $region2: #{bottleneck_forward.1} parent=1 // loop_pre_header
      _
    $region3: #{bottleneck_forward.1} parent=1 // loop_header
      %s13 = sphi 0, %s17
      %p14 = scmp.ge.s32.totalorder %s13, 4
      %s23 = sphi 0, %s25
      %s26 = sphi 0, %s23
      %s27 = sphi 0, %s26
      %s43 = sphi 0, %s27
      %s47 = sphi 0, %s47
      %s49 = sphi 0, %s47
      %s50 = sphi 0, %s49
      %s64 = sphi 0, %s50
      %s68 = sphi 0, %s68
      %s70 = sphi 0, %s68
      %s71 = sphi 0, %s70
      %s85 = sphi 0, %s71
      %s89 = sphi 0, %s89
      %s91 = sphi 0, %s89
      %s92 = sphi 0, %s91
      %s106 = sphi 0, %s92
      %s112 = sphi 0, %s114
      %s115 = sphi 0, %s112
      %s116 = sphi 0, %s115
      %s132 = sphi 0, %s116
    $region4: #{bottleneck_forward.1} parent=1 // loop_header_branch
      %16 = sbr.rel (%p14) target = $region8
    $region5: #{bottleneck_forward.1} parent=1 // loop_body
      %s18 = ssub.s32 %s13, 1
      %s19 = ssub.s32 %s13, 2
      %s20 = sadd.s32 %s13, 1
      %s21 = ssub.s32 %s13, %s20
      %p22 = scmp.eq.s32.totalorder %s21, 0
      %s24 = sadd.s32 %s23, 1
      %s25 = scalar_select %p22, %s23, %s24
      %p28 = pneg %p22
      %p29 = scmp.eq.s32.totalorder %s13, 1
      %p30 = por %p28, %p29
      %p31 = scmp.ne.s32.totalorder %s23, %s26
      %p32 = scmp.eq.s32.totalorder %s13, 0
      %p33 = por %p31, %p32
      %p34 = scmp.ne.s32.totalorder %s23, %s26
      %p35 = scmp.eq.s32.totalorder %s18, 1
      %p36 = por %p34, %p35
      %p37 = scmp.ne.s32.totalorder %s26, %s27
      %p38 = scmp.eq.s32.totalorder %s18, 0
      %p39 = por %p37, %p38
      %p40 = scmp.ne.s32.totalorder %s26, %s27
      %p41 = scmp.eq.s32.totalorder %s19, 1
      %p42 = por %p40, %p41
      %p44 = scmp.ne.s32.totalorder %s27, %s43
      %p45 = scmp.eq.s32.totalorder %s19, 0
      %p46 = por %p44, %p45
      %s48 = sadd.s32 %s47, 1
      %p51 = scmp.eq.s32.totalorder %s13, 1
      %p52 = scmp.ne.s32.totalorder %s47, %s49
      %p53 = scmp.eq.s32.totalorder %s13, 0
      %p54 = por %p52, %p53
      %p55 = scmp.ne.s32.totalorder %s47, %s49
      %p56 = scmp.eq.s32.totalorder %s18, 1
      %p57 = por %p55, %p56
      %p58 = scmp.ne.s32.totalorder %s49, %s50
      %p59 = scmp.eq.s32.totalorder %s18, 0
      %p60 = por %p58, %p59
      %p61 = scmp.ne.s32.totalorder %s49, %s50
      %p62 = scmp.eq.s32.totalorder %s19, 1
      %p63 = por %p61, %p62
      %p65 = scmp.ne.s32.totalorder %s50, %s64
      %p66 = scmp.eq.s32.totalorder %s19, 0
      %p67 = por %p65, %p66
      %s69 = sadd.s32 %s68, 1
      %p72 = scmp.eq.s32.totalorder %s13, 1
      %p73 = scmp.ne.s32.totalorder %s68, %s70
      %p74 = scmp.eq.s32.totalorder %s13, 0
      %p75 = por %p73, %p74
      %p76 = scmp.ne.s32.totalorder %s68, %s70
      %p77 = scmp.eq.s32.totalorder %s18, 1
      %p78 = por %p76, %p77
      %p79 = scmp.ne.s32.totalorder %s70, %s71
      %p80 = scmp.eq.s32.totalorder %s18, 0
      %p81 = por %p79, %p80
      %p82 = scmp.ne.s32.totalorder %s70, %s71
      %p83 = scmp.eq.s32.totalorder %s19, 1
      %p84 = por %p82, %p83
      %p86 = scmp.ne.s32.totalorder %s71, %s85
      %p87 = scmp.eq.s32.totalorder %s19, 0
      %p88 = por %p86, %p87
      %s90 = sadd.s32 %s89, 1
      %p93 = scmp.eq.s32.totalorder %s13, 1
      %p94 = scmp.ne.s32.totalorder %s89, %s91
      %p95 = scmp.eq.s32.totalorder %s13, 0
      %p96 = por %p94, %p95
      %p97 = scmp.ne.s32.totalorder %s89, %s91
      %p98 = scmp.eq.s32.totalorder %s18, 1
      %p99 = por %p97, %p98
      %p100 = scmp.ne.s32.totalorder %s91, %s92
      %p101 = scmp.eq.s32.totalorder %s18, 0
      %p102 = por %p100, %p101
      %p103 = scmp.ne.s32.totalorder %s91, %s92
      %p104 = scmp.eq.s32.totalorder %s19, 1
      %p105 = por %p103, %p104
      %p107 = scmp.ne.s32.totalorder %s92, %s106
      %p108 = scmp.eq.s32.totalorder %s19, 0
      %p109 = por %p107, %p108
      %s110 = ssub.s32 %s13, %s20
      %p111 = scmp.eq.s32.totalorder %s110, 0
      %s113 = sadd.s32 %s112, 1
      %s114 = scalar_select %p111, %s112, %s113
      %p117 = pneg %p111
      %p118 = scmp.eq.s32.totalorder %s13, 1
      %p119 = por %p117, %p118
      %p120 = scmp.ne.s32.totalorder %s112, %s115
      %p121 = scmp.eq.s32.totalorder %s13, 0
      %p122 = por %p120, %p121
      %p123 = scmp.ne.s32.totalorder %s112, %s115
      %p124 = scmp.eq.s32.totalorder %s18, 1
      %p125 = por %p123, %p124
      %p126 = scmp.ne.s32.totalorder %s115, %s116
      %p127 = scmp.eq.s32.totalorder %s18, 0
      %p128 = por %p126, %p127
      %p129 = scmp.ne.s32.totalorder %s115, %s116
      %p130 = scmp.eq.s32.totalorder %s19, 1
      %p131 = por %p129, %p130
      %p133 = scmp.ne.s32.totalorder %s116, %s132
      %p134 = scmp.eq.s32.totalorder %s19, 0
      %p135 = por %p133, %p134
      %p136 = scmp.le.s32.totalorder 1, %s13
      %p137 = scmp.lt.s32.totalorder %s13, 3
      %p138 = pnand %p136, %p137
      %p139 = pneg %p138
      // Predicated region
      $region9: #{bottleneck_forward.1} parent=5 // pred_check
        _
      $region10: #{bottleneck_forward.1} parent=5 // pred_check_branch
        %141 = sbr.rel (%p138) target = $region12
      $region11: #{bottleneck_forward.1} parent=5 // pred_region
        %s142 = ssub.s32 %s13, 1
        // Predicated region
        $region13: #{bottleneck_forward.1} parent=11 // pred_check
          %p143 = pneg %p60
        $region14: #{bottleneck_forward.1} parent=11 // pred_check_branch
          %145 = sbr.rel (%p143) target = $region16
        $region15: #{bottleneck_forward.1} parent=11 // pred_region
          _
        $region16: #{bottleneck_forward.1} parent=11 // pred_fallthru
          _
        // Predicated region
        $region17: #{bottleneck_forward.1} parent=11 // pred_check
          %p146 = pneg %p81
        $region18: #{bottleneck_forward.1} parent=11 // pred_check_branch
          %148 = sbr.rel (%p146) target = $region20
        $region19: #{bottleneck_forward.1} parent=11 // pred_region
          _
        $region20: #{bottleneck_forward.1} parent=11 // pred_fallthru
          _
        // Predicated region
        $region21: #{bottleneck_forward.1} parent=11 // pred_check
          %p149 = pneg %p102
        $region22: #{bottleneck_forward.1} parent=11 // pred_check_branch
          %151 = sbr.rel (%p149) target = $region24
        $region23: #{bottleneck_forward.1} parent=11 // pred_region
          _
        $region24: #{bottleneck_forward.1} parent=11 // pred_fallthru
          _
      $region12: #{bottleneck_forward.1} parent=5 // pred_fallthru
        _
      %p152 = scmp.lt.s32.totalorder %s13, 2
      // Predicated region
      $region25: #{bottleneck_forward.1} parent=5 // pred_check
        %p153 = pneg %p152
      $region26: #{bottleneck_forward.1} parent=5 // pred_check_branch
        %155 = sbr.rel (%p153) target = $region28
      $region27: #{bottleneck_forward.1} parent=5 // pred_region
        // Predicated region
        $region29: #{bottleneck_forward.1} parent=27 // pred_check
          %p156 = pneg %p33
        $region30: #{bottleneck_forward.1} parent=27 // pred_check_branch
          %158 = sbr.rel (%p156) target = $region32
        $region31: #{bottleneck_forward.1} parent=27 // pred_region
          %p159 = scmp.lt.s32.totalorder %s13, 1
          %s160 = scalar_select %p159, %s13, 1
          %s161 = smul.addr %s160, 32
          %s162 = smul.addr %s161, 4
          %s163 = scalar_lea.vmem %s0, %s162
        $region32: #{bottleneck_forward.1} parent=27 // pred_fallthru
          _
      $region28: #{bottleneck_forward.1} parent=5 // pred_fallthru
        _
      %p164 = scmp.le.s32.totalorder 1, %s13
      %p165 = scmp.lt.s32.totalorder %s13, 3
      %p166 = pnand %p164, %p165
      %p167 = pneg %p166
      // Predicated region
      $region33: #{bottleneck_forward.1} parent=5 // pred_check
        _
      $region34: #{bottleneck_forward.1} parent=5 // pred_check_branch
        %169 = sbr.rel (%p166) target = $region36
      $region35: #{bottleneck_forward.1} parent=5 // pred_region
        %s170 = ssub.s32 %s13, 1
        %p171 = scmp.lt.s32.totalorder %s18, 1
        %s172 = scalar_select %p171, %s18, 1
        %s173 = smul.addr %s172, 32
        %s174 = smul.addr %s173, 4
        %s175 = scalar_lea.vmem %s0, %s174
        %p176 = pneg %p39
        %p177 = pneg %p36
        %p178 = pneg %p60
        %p179 = pneg %p57
        %p180 = pneg %p81
        %p181 = pneg %p78
        %p182 = pneg %p102
        %p183 = pneg %p99
        %p184 = pneg %p128
        %p185 = pneg %p125
        %s186 = sand.u32 %s115, 1
        %s187 = scalar_lea.sflag [#allocation4], %s186
        %s188 = sand.u32 %s115, 1
        %s189 = smul.addr %s188, 128
        %s190 = scalar_lea.vmem [#allocation3], %s189
        %p191 = scmp.lt.s32.totalorder %s18, 1
        %s192 = scalar_select %p191, %s18, 1
        %s193 = smul.addr %s192, 32
        %s194 = smul.addr %s193, 4
        %s195 = scalar_lea.vmem %s0, %s194
        %v197 = vld [vmem:[%s195] sm:$0xf]
        %v198 = vld [vmem:[%s195 + $0x4] sm:$0xf]
        %v199 = vld [vmem:[%s195 + $0x8] sm:$0xf]
        %v200 = vld [vmem:[%s195 + $0xc] sm:$0xf]
        %v201 = vld [vmem:[%s195 + $0x10] sm:$0xf]
        %v202 = vld [vmem:[%s195 + $0x14] sm:$0xf]
        %v203 = vld [vmem:[%s195 + $0x18] sm:$0xf]
        %v204 = vld [vmem:[%s195 + $0x1c] sm:$0xf]
        %v205 = vld [vmem:[%s195 + $0x20] sm:$0xf]
        %v206 = vld [vmem:[%s195 + $0x24] sm:$0xf]
        %v207 = vld [vmem:[%s195 + $0x28] sm:$0xf]
        %v208 = vld [vmem:[%s195 + $0x2c] sm:$0xf]
        %v209 = vld [vmem:[%s195 + $0x30] sm:$0xf]
        %v210 = vld [vmem:[%s195 + $0x34] sm:$0xf]
        %v211 = vld [vmem:[%s195 + $0x38] sm:$0xf]
        %v212 = vld [vmem:[%s195 + $0x3c] sm:$0xf]
        %v213 = vld [vmem:[%s195 + $0x40] sm:$0xf]
        %v214 = vld [vmem:[%s195 + $0x44] sm:$0xf]
        %v215 = vld [vmem:[%s195 + $0x48] sm:$0xf]
        %v216 = vld [vmem:[%s195 + $0x4c] sm:$0xf]
        %v217 = vld [vmem:[%s195 + $0x50] sm:$0xf]
        %v218 = vld [vmem:[%s195 + $0x54] sm:$0xf]
        %v219 = vld [vmem:[%s195 + $0x58] sm:$0xf]
        %v220 = vld [vmem:[%s195 + $0x5c] sm:$0xf]
        %v221 = vld [vmem:[%s195 + $0x60] sm:$0xf]
        %v222 = vld [vmem:[%s195 + $0x64] sm:$0xf]
        %v223 = vld [vmem:[%s195 + $0x68] sm:$0xf]
        %v224 = vld [vmem:[%s195 + $0x6c] sm:$0xf]
        %v225 = vld [vmem:[%s195 + $0x70] sm:$0xf]
        %v226 = vld [vmem:[%s195 + $0x74] sm:$0xf]
        %v227 = vld [vmem:[%s195 + $0x78] sm:$0xf]
        %v228 = vld [vmem:[%s195 + $0x7c] sm:$0xf]
        %v229 = vld [vmem:[%s1] sm:$0xf]
        %v230 = vld [vmem:[%s1 + $0x4] sm:$0xf]
        %v231 = vld [vmem:[%s1 + $0x8] sm:$0xf]
        %v232 = vld [vmem:[%s1 + $0xc] sm:$0xf]
        %v233 = vld [vmem:[%s1 + $0x10] sm:$0xf]
        %v234 = vld [vmem:[%s1 + $0x14] sm:$0xf]
        %v235 = vld [vmem:[%s1 + $0x18] sm:$0xf]
        %v236 = vld [vmem:[%s1 + $0x1c] sm:$0xf]
        %v237 = vld [vmem:[%s1 + $0x20] sm:$0xf]
        %v238 = vld [vmem:[%s1 + $0x24] sm:$0xf]
        %v239 = vld [vmem:[%s1 + $0x28] sm:$0xf]
        %v240 = vld [vmem:[%s1 + $0x2c] sm:$0xf]
        %v241 = vld [vmem:[%s1 + $0x30] sm:$0xf]
        %v242 = vld [vmem:[%s1 + $0x34] sm:$0xf]
        %v243 = vld [vmem:[%s1 + $0x38] sm:$0xf]
        %v244 = vld [vmem:[%s1 + $0x3c] sm:$0xf]
        %v277 = vunpack.c.l.b16 %v197
        %v278 = vunpack.c.l.b16 %v198
        %v279 = vunpack.c.l.b16 %v199
        %v280 = vunpack.c.l.b16 %v200
        %v281 = vunpack.c.l.b16 %v201
        %v282 = vunpack.c.l.b16 %v202
        %v283 = vunpack.c.l.b16 %v203
        %v284 = vunpack.c.l.b16 %v204
        %v285 = vunpack.c.l.b16 %v205
        %v286 = vunpack.c.l.b16 %v206
        %v287 = vunpack.c.l.b16 %v207
        %v288 = vunpack.c.l.b16 %v208
        %v289 = vunpack.c.l.b16 %v209
        %v290 = vunpack.c.l.b16 %v210
        %v291 = vunpack.c.l.b16 %v211
        %v292 = vunpack.c.l.b16 %v212
        %v293 = vunpack.c.l.b16 %v213
        %v294 = vunpack.c.l.b16 %v214
        %v295 = vunpack.c.l.b16 %v215
        %v296 = vunpack.c.l.b16 %v216
        %v297 = vunpack.c.l.b16 %v217
        %v298 = vunpack.c.l.b16 %v218
        %v299 = vunpack.c.l.b16 %v219
        %v300 = vunpack.c.l.b16 %v220
        %v301 = vunpack.c.l.b16 %v221
        %v302 = vunpack.c.l.b16 %v222
        %v303 = vunpack.c.l.b16 %v223
        %v304 = vunpack.c.l.b16 %v224
        %v305 = vunpack.c.l.b16 %v225
        %v306 = vunpack.c.l.b16 %v226
        %v307 = vunpack.c.l.b16 %v227
        %v308 = vunpack.c.l.b16 %v228
        %v309 = vpack.c.b16 %v278, %v277
        %v310 = vpack.c.b16 %v280, %v279
        %v311 = vpack.c.b16 %v282, %v281
        %v312 = vpack.c.b16 %v284, %v283
        %v313 = vpack.c.b16 %v286, %v285
        %v314 = vpack.c.b16 %v288, %v287
        %v315 = vpack.c.b16 %v290, %v289
        %v316 = vpack.c.b16 %v292, %v291
        %v317 = vpack.c.b16 %v294, %v293
        %v318 = vpack.c.b16 %v296, %v295
        %v319 = vpack.c.b16 %v298, %v297
        %v320 = vpack.c.b16 %v300, %v299
        %v321 = vpack.c.b16 %v302, %v301
        %v322 = vpack.c.b16 %v304, %v303
        %v323 = vpack.c.b16 %v306, %v305
        %v324 = vpack.c.b16 %v308, %v307
        %v357 = vunpack.c.l.b16 %v229
        %v358 = vunpack.c.l.b16 %v230
        %v359 = vunpack.c.l.b16 %v231
        %v360 = vunpack.c.l.b16 %v232
        %v361 = vunpack.c.l.b16 %v233
        %v362 = vunpack.c.l.b16 %v234
        %v363 = vunpack.c.l.b16 %v235
        %v364 = vunpack.c.l.b16 %v236
        %v365 = vunpack.c.l.b16 %v237
        %v366 = vunpack.c.l.b16 %v238
        %v367 = vunpack.c.l.b16 %v239
        %v368 = vunpack.c.l.b16 %v240
        %v369 = vunpack.c.l.b16 %v241
        %v370 = vunpack.c.l.b16 %v242
        %v371 = vunpack.c.l.b16 %v243
        %v372 = vunpack.c.l.b16 %v244
        %v373 = vpack.c.b16 %v358, %v357
        %v374 = vpack.c.b16 %v360, %v359
        %v375 = vpack.c.b16 %v362, %v361
        %v376 = vpack.c.b16 %v364, %v363
        %v377 = vpack.c.b16 %v366, %v365
        %v378 = vpack.c.b16 %v368, %v367
        %v379 = vpack.c.b16 %v370, %v369
        %v380 = vpack.c.b16 %v372, %v371
        %389 = vmatprep.subr.bf16.mxu0 0
        %390 = vmatpush1.bf16.msra.mxu0 %v380
        %391 = vmatprep.subr.bf16.mxu0 0
        %392 = vmatpush1.bf16.msra.mxu0 %v379
        %393 = vmatprep.subr.bf16.mxu0 0
        %394 = vmatpush1.bf16.msra.mxu0 %v378
        %395 = vmatprep.subr.bf16.mxu0 0
        %396 = vmatpush1.bf16.msra.mxu0 %v377
        %397 = vmatprep.subr.bf16.mxu0 0
        %398 = vmatpush1.bf16.msra.mxu0 %v376
        %399 = vmatprep.subr.bf16.mxu0 0
        %400 = vmatpush1.bf16.msra.mxu0 %v375
        %401 = vmatprep.subr.bf16.mxu0 0
        %402 = vmatpush1.bf16.msra.mxu0 %v374
        %403 = vmatprep.subr.bf16.mxu0 0
        %404 = vmatpush1.bf16.msra.mxu0 %v373
        %405 = vmatprep.subr.bf16.mxu0 0
        %406 = vmatpush2.bf16.msra.mxu0 0
        %407 = vmatprep.subr.bf16.mxu0 0
        %408 = vmatpush2.bf16.msra.mxu0 0
        %409 = vmatprep.subr.bf16.mxu0 0
        %410 = vmatpush2.bf16.msra.mxu0 0
        %411 = vmatprep.subr.bf16.mxu0 0
        %412 = vmatpush2.bf16.msra.mxu0 0
        %413 = vmatprep.subr.bf16.mxu0 0
        %414 = vmatpush2.bf16.msra.mxu0 0
        %415 = vmatprep.subr.bf16.mxu0 0
        %416 = vmatpush2.bf16.msra.mxu0 0
        %417 = vmatprep.subr.bf16.mxu0 0
        %418 = vmatpush2.bf16.msra.mxu0 0
        %419 = vmatprep.subr.bf16.mxu0 0
        %420 = vmatpush2.bf16.msra.mxu0 0
        %421 = vmatprep.mubr.bf16.mxu0 0
        %422 = vmatmul.mubr.bf16.gmra.mxu0 %v309
        %v423 = vpop.f32.mrf.mxu0
        %v424 = vadd.f32 0.0, %v423
        %v425 = vpop.f32.mrf.mxu0
        %v426 = vpop.f32.mrf.mxu0
        %v427 = vadd.f32 0.0, %v426
        %v428 = vpop.f32.mrf.mxu0
        %429 = vmatprep.mubr.bf16.mxu0 0
        %430 = vmatmul.mubr.bf16.gmra.mxu0 %v310
        %v431 = vpop.f32.mrf.mxu0
        %v432 = vadd.f32 0.0, %v431
        %v433 = vpop.f32.mrf.mxu0
        %v434 = vpop.f32.mrf.mxu0
        %v435 = vadd.f32 0.0, %v434
        %v436 = vpop.f32.mrf.mxu0
        %437 = vmatprep.mubr.bf16.mxu0 0
        %438 = vmatmul.mubr.bf16.gmra.mxu0 %v311
        %v439 = vpop.f32.mrf.mxu0
        %v440 = vadd.f32 0.0, %v439
        %v441 = vpop.f32.mrf.mxu0
        %v442 = vpop.f32.mrf.mxu0
        %v443 = vadd.f32 0.0, %v442
        %v444 = vpop.f32.mrf.mxu0
        %445 = vmatprep.mubr.bf16.mxu0 0
        %446 = vmatmul.mubr.bf16.gmra.mxu0 %v312
        %v447 = vpop.f32.mrf.mxu0
        %v448 = vadd.f32 0.0, %v447
        %v449 = vpop.f32.mrf.mxu0
        %v450 = vpop.f32.mrf.mxu0
        %v451 = vadd.f32 0.0, %v450
        %v452 = vpop.f32.mrf.mxu0
        %453 = vmatprep.mubr.bf16.mxu0 0
        %454 = vmatmul.mubr.bf16.gmra.mxu0 %v313
        %v455 = vpop.f32.mrf.mxu0
        %v456 = vadd.f32 0.0, %v455
        %v457 = vpop.f32.mrf.mxu0
        %v458 = vpop.f32.mrf.mxu0
        %v459 = vadd.f32 0.0, %v458
        %v460 = vpop.f32.mrf.mxu0
        %461 = vmatprep.mubr.bf16.mxu0 0
        %462 = vmatmul.mubr.bf16.gmra.mxu0 %v314
        %v463 = vpop.f32.mrf.mxu0
        %v464 = vadd.f32 0.0, %v463
        %v465 = vpop.f32.mrf.mxu0
        %v466 = vpop.f32.mrf.mxu0
        %v467 = vadd.f32 0.0, %v466
        %v468 = vpop.f32.mrf.mxu0
        %469 = vmatprep.mubr.bf16.mxu0 0
        %470 = vmatmul.mubr.bf16.gmra.mxu0 %v315
        %v471 = vpop.f32.mrf.mxu0
        %v472 = vadd.f32 0.0, %v471
        %v473 = vpop.f32.mrf.mxu0
        %v474 = vpop.f32.mrf.mxu0
        %v475 = vadd.f32 0.0, %v474
        %v476 = vpop.f32.mrf.mxu0
        %477 = vmatprep.mubr.bf16.mxu0 0
        %478 = vmatmul.mubr.bf16.gmra.mxu0 %v316
        %v479 = vpop.f32.mrf.mxu0
        %v480 = vadd.f32 0.0, %v479
        %v481 = vpop.f32.mrf.mxu0
        %v482 = vpop.f32.mrf.mxu0
        %v483 = vadd.f32 0.0, %v482
        %v484 = vpop.f32.mrf.mxu0
        %485 = vmatprep.mubr.bf16.mxu0 0
        %486 = vmatmul.mubr.bf16.gmra.mxu0 %v317
        %v487 = vpop.f32.mrf.mxu0
        %v488 = vadd.f32 0.0, %v487
        %v489 = vpop.f32.mrf.mxu0
        %v490 = vpop.f32.mrf.mxu0
        %v491 = vadd.f32 0.0, %v490
        %v492 = vpop.f32.mrf.mxu0
        %493 = vmatprep.mubr.bf16.mxu0 0
        %494 = vmatmul.mubr.bf16.gmra.mxu0 %v318
        %v495 = vpop.f32.mrf.mxu0
        %v496 = vadd.f32 0.0, %v495
        %v497 = vpop.f32.mrf.mxu0
        %v498 = vpop.f32.mrf.mxu0
        %v499 = vadd.f32 0.0, %v498
        %v500 = vpop.f32.mrf.mxu0
        %501 = vmatprep.mubr.bf16.mxu0 0
        %502 = vmatmul.mubr.bf16.gmra.mxu0 %v319
        %v503 = vpop.f32.mrf.mxu0
        %v504 = vadd.f32 0.0, %v503
        %v505 = vpop.f32.mrf.mxu0
        %v506 = vpop.f32.mrf.mxu0
        %v507 = vadd.f32 0.0, %v506
        %v508 = vpop.f32.mrf.mxu0
        %509 = vmatprep.mubr.bf16.mxu0 0
        %510 = vmatmul.mubr.bf16.gmra.mxu0 %v320
        %v511 = vpop.f32.mrf.mxu0
        %v512 = vadd.f32 0.0, %v511
        %v513 = vpop.f32.mrf.mxu0
        %v514 = vpop.f32.mrf.mxu0
        %v515 = vadd.f32 0.0, %v514
        %v516 = vpop.f32.mrf.mxu0
        %517 = vmatprep.mubr.bf16.mxu0 0
        %518 = vmatmul.mubr.bf16.gmra.mxu0 %v321
        %v519 = vpop.f32.mrf.mxu0
        %v520 = vadd.f32 0.0, %v519
        %v521 = vpop.f32.mrf.mxu0
        %v522 = vpop.f32.mrf.mxu0
        %v523 = vadd.f32 0.0, %v522
        %v524 = vpop.f32.mrf.mxu0
        %525 = vmatprep.mubr.bf16.mxu0 0
        %526 = vmatmul.mubr.bf16.gmra.mxu0 %v322
        %v527 = vpop.f32.mrf.mxu0
        %v528 = vadd.f32 0.0, %v527
        %v529 = vpop.f32.mrf.mxu0
        %v530 = vpop.f32.mrf.mxu0
        %v531 = vadd.f32 0.0, %v530
        %v532 = vpop.f32.mrf.mxu0
        %533 = vmatprep.mubr.bf16.mxu0 0
        %534 = vmatmul.mubr.bf16.gmra.mxu0 %v323
        %v535 = vpop.f32.mrf.mxu0
        %v536 = vadd.f32 0.0, %v535
        %v537 = vpop.f32.mrf.mxu0
        %v538 = vpop.f32.mrf.mxu0
        %v539 = vadd.f32 0.0, %v538
        %v540 = vpop.f32.mrf.mxu0
        %541 = vmatprep.mubr.bf16.mxu0 0
        %542 = vmatmul.mubr.bf16.gmra.mxu0 %v324
        %v543 = vpop.f32.mrf.mxu0
        %v544 = vadd.f32 0.0, %v543
        %v545 = vpop.f32.mrf.mxu0
        %v546 = vpop.f32.mrf.mxu0
        %v547 = vadd.f32 0.0, %v546
        %v548 = vpop.f32.mrf.mxu0
        %549 = vdwg.mxu0
        %v550 = vmax.f32 %v424, 0.0
        %v551 = vmax.f32 %v427, 0.0
        %v552 = vmax.f32 %v432, 0.0
        %v553 = vmax.f32 %v435, 0.0
        %v554 = vmax.f32 %v440, 0.0
        %v555 = vmax.f32 %v443, 0.0
        %v556 = vmax.f32 %v448, 0.0
        %v557 = vmax.f32 %v451, 0.0
        %v558 = vmax.f32 %v456, 0.0
        %v559 = vmax.f32 %v459, 0.0
        %v560 = vmax.f32 %v464, 0.0
        %v561 = vmax.f32 %v467, 0.0
        %v562 = vmax.f32 %v472, 0.0
        %v563 = vmax.f32 %v475, 0.0
        %v564 = vmax.f32 %v480, 0.0
        %v565 = vmax.f32 %v483, 0.0
        %v566 = vmax.f32 %v488, 0.0
        %v567 = vmax.f32 %v491, 0.0
        %v568 = vmax.f32 %v496, 0.0
        %v569 = vmax.f32 %v499, 0.0
        %v570 = vmax.f32 %v504, 0.0
        %v571 = vmax.f32 %v507, 0.0
        %v572 = vmax.f32 %v512, 0.0
        %v573 = vmax.f32 %v515, 0.0
        %v574 = vmax.f32 %v520, 0.0
        %v575 = vmax.f32 %v523, 0.0
        %v576 = vmax.f32 %v528, 0.0
        %v577 = vmax.f32 %v531, 0.0
        %v578 = vmax.f32 %v536, 0.0
        %v579 = vmax.f32 %v539, 0.0
        %v580 = vmax.f32 %v544, 0.0
        %v581 = vmax.f32 %v547, 0.0
        %vm582 = vcmask 261120
        %583 = vst.msk [vmem:[#allocation2] sm:$0xff] %vm582, 0.0
        %584 = vst.msk [vmem:[#allocation2 + $0x8] sm:$0xff] %vm582, 0.0
        %585 = vst.msk [vmem:[#allocation2 + $0x10] sm:$0xff] %vm582, 0.0
        %586 = vst.msk [vmem:[#allocation2 + $0x18] sm:$0xff] %vm582, 0.0
        %587 = vst.msk [vmem:[#allocation2 + $0x20] sm:$0xff] %vm582, 0.0
        %588 = vst.msk [vmem:[#allocation2 + $0x28] sm:$0xff] %vm582, 0.0
        %589 = vst.msk [vmem:[#allocation2 + $0x30] sm:$0xff] %vm582, 0.0
        %590 = vst.msk [vmem:[#allocation2 + $0x38] sm:$0xff] %vm582, 0.0
        %591 = vst.msk [vmem:[#allocation2 + $0x40] sm:$0xff] %vm582, 0.0
        %592 = vst.msk [vmem:[#allocation2 + $0x48] sm:$0xff] %vm582, 0.0
        %593 = vst.msk [vmem:[#allocation2 + $0x50] sm:$0xff] %vm582, 0.0
        %594 = vst.msk [vmem:[#allocation2 + $0x58] sm:$0xff] %vm582, 0.0
        %595 = vst.msk [vmem:[#allocation2 + $0x60] sm:$0xff] %vm582, 0.0
        %596 = vst.msk [vmem:[#allocation2 + $0x68] sm:$0xff] %vm582, 0.0
        %597 = vst.msk [vmem:[#allocation2 + $0x70] sm:$0xff] %vm582, 0.0
        %598 = vst.msk [vmem:[#allocation2 + $0x78] sm:$0xff] %vm582, 0.0
        %599 = vst.msk [vmem:[#allocation2 + $0x80] sm:$0xff] %vm582, 0.0
        %600 = vst.msk [vmem:[#allocation2 + $0x88] sm:$0xff] %vm582, 0.0
        %601 = vst.msk [vmem:[#allocation2 + $0x90] sm:$0xff] %vm582, 0.0
        %602 = vst.msk [vmem:[#allocation2 + $0x98] sm:$0xff] %vm582, 0.0
        %603 = vst.msk [vmem:[#allocation2 + $0xa0] sm:$0xff] %vm582, 0.0
        %604 = vst.msk [vmem:[#allocation2 + $0xa8] sm:$0xff] %vm582, 0.0
        %605 = vst.msk [vmem:[#allocation2 + $0xb0] sm:$0xff] %vm582, 0.0
        %606 = vst.msk [vmem:[#allocation2 + $0xb8] sm:$0xff] %vm582, 0.0
        %607 = vst.msk [vmem:[#allocation2 + $0xc0] sm:$0xff] %vm582, 0.0
        %608 = vst.msk [vmem:[#allocation2 + $0xc8] sm:$0xff] %vm582, 0.0
        %609 = vst.msk [vmem:[#allocation2 + $0xd0] sm:$0xff] %vm582, 0.0
        %610 = vst.msk [vmem:[#allocation2 + $0xd8] sm:$0xff] %vm582, 0.0
        %611 = vst.msk [vmem:[#allocation2 + $0xe0] sm:$0xff] %vm582, 0.0
        %612 = vst.msk [vmem:[#allocation2 + $0xe8] sm:$0xff] %vm582, 0.0
        %613 = vst.msk [vmem:[#allocation2 + $0xf0] sm:$0xff] %vm582, 0.0
        %614 = vst.msk [vmem:[#allocation2 + $0xf8] sm:$0xff] %vm582, 0.0
        %615 = vst.msk [vmem:[#allocation2 + $0x100] sm:$0xff] %vm582, 0.0
        %616 = vst.msk [vmem:[#allocation2 + $0x108] sm:$0xff] %vm582, 0.0
        %617 = vst.msk [vmem:[#allocation2 + $0x110] sm:$0xff] %vm582, 0.0
        %618 = vst.msk [vmem:[#allocation2 + $0x118] sm:$0xff] %vm582, 0.0
        %619 = vst.msk [vmem:[#allocation2 + $0x120] sm:$0xff] %vm582, 0.0
        %620 = vst.msk [vmem:[#allocation2 + $0x128] sm:$0xff] %vm582, 0.0
        %621 = vst.msk [vmem:[#allocation2 + $0x130] sm:$0xff] %vm582, 0.0
        %622 = vst.msk [vmem:[#allocation2 + $0x138] sm:$0xff] %vm582, 0.0
        %623 = vst.msk [vmem:[#allocation2 + $0x140] sm:$0xff] %vm582, 0.0
        %624 = vst.msk [vmem:[#allocation2 + $0x148] sm:$0xff] %vm582, 0.0
        %625 = vst.msk [vmem:[#allocation2 + $0x150] sm:$0xff] %vm582, 0.0
        %626 = vst.msk [vmem:[#allocation2 + $0x158] sm:$0xff] %vm582, 0.0
        %627 = vst.msk [vmem:[#allocation2 + $0x160] sm:$0xff] %vm582, 0.0
        %628 = vst.msk [vmem:[#allocation2 + $0x168] sm:$0xff] %vm582, 0.0
        %629 = vst.msk [vmem:[#allocation2 + $0x170] sm:$0xff] %vm582, 0.0
        %630 = vst.msk [vmem:[#allocation2 + $0x178] sm:$0xff] %vm582, 0.0
        %631 = vst.msk [vmem:[#allocation2 + $0x180] sm:$0xff] %vm582, 0.0
        %632 = vst.msk [vmem:[#allocation2 + $0x188] sm:$0xff] %vm582, 0.0
        %633 = vst.msk [vmem:[#allocation2 + $0x190] sm:$0xff] %vm582, 0.0
        %634 = vst.msk [vmem:[#allocation2 + $0x198] sm:$0xff] %vm582, 0.0
        %635 = vst.msk [vmem:[#allocation2 + $0x1a0] sm:$0xff] %vm582, 0.0
        %636 = vst.msk [vmem:[#allocation2 + $0x1a8] sm:$0xff] %vm582, 0.0
        %s637 = scalar_lea.vmem [#allocation2], 24
        %638 = vst.msk [vmem:[%s637 + $0x1] sm:$0xff] %vm582, %v550
        %639 = vst.msk [vmem:[%s637 + $0x9] sm:$0xff] %vm582, %v551
        %640 = vst.msk [vmem:[%s637 + $0x19] sm:$0xff] %vm582, %v552
        %641 = vst.msk [vmem:[%s637 + $0x21] sm:$0xff] %vm582, %v553
        %642 = vst.msk [vmem:[%s637 + $0x31] sm:$0xff] %vm582, %v554
        %643 = vst.msk [vmem:[%s637 + $0x39] sm:$0xff] %vm582, %v555
        %644 = vst.msk [vmem:[%s637 + $0x49] sm:$0xff] %vm582, %v556
        %645 = vst.msk [vmem:[%s637 + $0x51] sm:$0xff] %vm582, %v557
        %646 = vst.msk [vmem:[%s637 + $0x61] sm:$0xff] %vm582, %v558
        %647 = vst.msk [vmem:[%s637 + $0x69] sm:$0xff] %vm582, %v559
        %648 = vst.msk [vmem:[%s637 + $0x79] sm:$0xff] %vm582, %v560
        %649 = vst.msk [vmem:[%s637 + $0x81] sm:$0xff] %vm582, %v561
        %650 = vst.msk [vmem:[%s637 + $0x91] sm:$0xff] %vm582, %v562
        %651 = vst.msk [vmem:[%s637 + $0x99] sm:$0xff] %vm582, %v563
        %652 = vst.msk [vmem:[%s637 + $0xa9] sm:$0xff] %vm582, %v564
        %653 = vst.msk [vmem:[%s637 + $0xb1] sm:$0xff] %vm582, %v565
        %654 = vst.msk [vmem:[%s637 + $0xc1] sm:$0xff] %vm582, %v566
        %655 = vst.msk [vmem:[%s637 + $0xc9] sm:$0xff] %vm582, %v567
        %656 = vst.msk [vmem:[%s637 + $0xd9] sm:$0xff] %vm582, %v568
        %657 = vst.msk [vmem:[%s637 + $0xe1] sm:$0xff] %vm582, %v569
        %658 = vst.msk [vmem:[%s637 + $0xf1] sm:$0xff] %vm582, %v570
        %659 = vst.msk [vmem:[%s637 + $0xf9] sm:$0xff] %vm582, %v571
        %660 = vst.msk [vmem:[%s637 + $0x109] sm:$0xff] %vm582, %v572
        %661 = vst.msk [vmem:[%s637 + $0x111] sm:$0xff] %vm582, %v573
        %662 = vst.msk [vmem:[%s637 + $0x121] sm:$0xff] %vm582, %v574
        %663 = vst.msk [vmem:[%s637 + $0x129] sm:$0xff] %vm582, %v575
        %664 = vst.msk [vmem:[%s637 + $0x139] sm:$0xff] %vm582, %v576
        %665 = vst.msk [vmem:[%s637 + $0x141] sm:$0xff] %vm582, %v577
        %666 = vst.msk [vmem:[%s637 + $0x151] sm:$0xff] %vm582, %v578
        %667 = vst.msk [vmem:[%s637 + $0x159] sm:$0xff] %vm582, %v579
        %668 = vst.msk [vmem:[%s637 + $0x169] sm:$0xff] %vm582, %v580
        %669 = vst.msk [vmem:[%s637 + $0x171] sm:$0xff] %vm582, %v581
        %v670 = vld [vmem:[#allocation2] sm:$0xff]
        %v671 = vld [vmem:[#allocation2 + $0x8] sm:$0xff]
        %v672 = vld [vmem:[#allocation2 + $0x18] sm:$0xff]
        %v673 = vld [vmem:[#allocation2 + $0x20] sm:$0xff]
        %v674 = vld [vmem:[#allocation2 + $0x30] sm:$0xff]
        %v675 = vld [vmem:[#allocation2 + $0x38] sm:$0xff]
        %v676 = vld [vmem:[#allocation2 + $0x48] sm:$0xff]
        %v677 = vld [vmem:[#allocation2 + $0x50] sm:$0xff]
        %v678 = vld [vmem:[#allocation2 + $0x60] sm:$0xff]
        %v679 = vld [vmem:[#allocation2 + $0x68] sm:$0xff]
        %v680 = vld [vmem:[#allocation2 + $0x78] sm:$0xff]
        %v681 = vld [vmem:[#allocation2 + $0x80] sm:$0xff]
        %v682 = vld [vmem:[#allocation2 + $0x90] sm:$0xff]
        %v683 = vld [vmem:[#allocation2 + $0x98] sm:$0xff]
        %v684 = vld [vmem:[#allocation2 + $0xa8] sm:$0xff]
        %v685 = vld [vmem:[#allocation2 + $0xb0] sm:$0xff]
        %v686 = vld [vmem:[#allocation2 + $0xc0] sm:$0xff]
        %v687 = vld [vmem:[#allocation2 + $0xc8] sm:$0xff]
        %v688 = vld [vmem:[#allocation2 + $0xd8] sm:$0xff]
        %v689 = vld [vmem:[#allocation2 + $0xe0] sm:$0xff]
        %v690 = vld [vmem:[#allocation2 + $0xf0] sm:$0xff]
        %v691 = vld [vmem:[#allocation2 + $0xf8] sm:$0xff]
        %v692 = vld [vmem:[#allocation2 + $0x108] sm:$0xff]
        %v693 = vld [vmem:[#allocation2 + $0x110] sm:$0xff]
        %v694 = vld [vmem:[#allocation2 + $0x120] sm:$0xff]
        %v695 = vld [vmem:[#allocation2 + $0x128] sm:$0xff]
        %v696 = vld [vmem:[#allocation2 + $0x138] sm:$0xff]
        %v697 = vld [vmem:[#allocation2 + $0x140] sm:$0xff]
        %v698 = vld [vmem:[#allocation2 + $0x150] sm:$0xff]
        %v699 = vld [vmem:[#allocation2 + $0x158] sm:$0xff]
        %v700 = vld [vmem:[#allocation2 + $0x168] sm:$0xff]
        %v701 = vld [vmem:[#allocation2 + $0x170] sm:$0xff]
        %v702 = vld [vmem:[#allocation2 + $0x1] sm:$0xff]
        %v703 = vld [vmem:[#allocation2 + $0x9] sm:$0xff]
        %v704 = vld [vmem:[#allocation2 + $0x19] sm:$0xff]
        %v705 = vld [vmem:[#allocation2 + $0x21] sm:$0xff]
        %v706 = vld [vmem:[#allocation2 + $0x31] sm:$0xff]
        %v707 = vld [vmem:[#allocation2 + $0x39] sm:$0xff]
        %v708 = vld [vmem:[#allocation2 + $0x49] sm:$0xff]
        %v709 = vld [vmem:[#allocation2 + $0x51] sm:$0xff]
        %v710 = vld [vmem:[#allocation2 + $0x61] sm:$0xff]
        %v711 = vld [vmem:[#allocation2 + $0x69] sm:$0xff]
        %v712 = vld [vmem:[#allocation2 + $0x79] sm:$0xff]
        %v713 = vld [vmem:[#allocation2 + $0x81] sm:$0xff]
        %v714 = vld [vmem:[#allocation2 + $0x91] sm:$0xff]
        %v715 = vld [vmem:[#allocation2 + $0x99] sm:$0xff]
        %v716 = vld [vmem:[#allocation2 + $0xa9] sm:$0xff]
        %v717 = vld [vmem:[#allocation2 + $0xb1] sm:$0xff]
        %v718 = vld [vmem:[#allocation2 + $0xc1] sm:$0xff]
        %v719 = vld [vmem:[#allocation2 + $0xc9] sm:$0xff]
        %v720 = vld [vmem:[#allocation2 + $0xd9] sm:$0xff]
        %v721 = vld [vmem:[#allocation2 + $0xe1] sm:$0xff]
        %v722 = vld [vmem:[#allocation2 + $0xf1] sm:$0xff]
        %v723 = vld [vmem:[#allocation2 + $0xf9] sm:$0xff]
        %v724 = vld [vmem:[#allocation2 + $0x109] sm:$0xff]
        %v725 = vld [vmem:[#allocation2 + $0x111] sm:$0xff]
        %v726 = vld [vmem:[#allocation2 + $0x121] sm:$0xff]
        %v727 = vld [vmem:[#allocation2 + $0x129] sm:$0xff]
        %v728 = vld [vmem:[#allocation2 + $0x139] sm:$0xff]
        %v729 = vld [vmem:[#allocation2 + $0x141] sm:$0xff]
        %v730 = vld [vmem:[#allocation2 + $0x151] sm:$0xff]
        %v731 = vld [vmem:[#allocation2 + $0x159] sm:$0xff]
        %v732 = vld [vmem:[#allocation2 + $0x169] sm:$0xff]
        %v733 = vld [vmem:[#allocation2 + $0x171] sm:$0xff]
        %v734 = vld [vmem:[#allocation2 + $0x2] sm:$0xff]
        %v735 = vld [vmem:[#allocation2 + $0xa] sm:$0xff]
        %v736 = vld [vmem:[#allocation2 + $0x1a] sm:$0xff]
        %v737 = vld [vmem:[#allocation2 + $0x22] sm:$0xff]
        %v738 = vld [vmem:[#allocation2 + $0x32] sm:$0xff]
        %v739 = vld [vmem:[#allocation2 + $0x3a] sm:$0xff]
        %v740 = vld [vmem:[#allocation2 + $0x4a] sm:$0xff]
        %v741 = vld [vmem:[#allocation2 + $0x52] sm:$0xff]
        %v742 = vld [vmem:[#allocation2 + $0x62] sm:$0xff]
        %v743 = vld [vmem:[#allocation2 + $0x6a] sm:$0xff]
        %v744 = vld [vmem:[#allocation2 + $0x7a] sm:$0xff]
        %v745 = vld [vmem:[#allocation2 + $0x82] sm:$0xff]
        %v746 = vld [vmem:[#allocation2 + $0x92] sm:$0xff]
        %v747 = vld [vmem:[#allocation2 + $0x9a] sm:$0xff]
        %v748 = vld [vmem:[#allocation2 + $0xaa] sm:$0xff]
        %v749 = vld [vmem:[#allocation2 + $0xb2] sm:$0xff]
        %v750 = vld [vmem:[#allocation2 + $0xc2] sm:$0xff]
        %v751 = vld [vmem:[#allocation2 + $0xca] sm:$0xff]
        %v752 = vld [vmem:[#allocation2 + $0xda] sm:$0xff]
        %v753 = vld [vmem:[#allocation2 + $0xe2] sm:$0xff]
        %v754 = vld [vmem:[#allocation2 + $0xf2] sm:$0xff]
        %v755 = vld [vmem:[#allocation2 + $0xfa] sm:$0xff]
        %v756 = vld [vmem:[#allocation2 + $0x10a] sm:$0xff]
        %v757 = vld [vmem:[#allocation2 + $0x112] sm:$0xff]
        %v758 = vld [vmem:[#allocation2 + $0x122] sm:$0xff]
        %v759 = vld [vmem:[#allocation2 + $0x12a] sm:$0xff]
        %v760 = vld [vmem:[#allocation2 + $0x13a] sm:$0xff]
        %v761 = vld [vmem:[#allocation2 + $0x142] sm:$0xff]
        %v762 = vld [vmem:[#allocation2 + $0x152] sm:$0xff]
        %v763 = vld [vmem:[#allocation2 + $0x15a] sm:$0xff]
        %v764 = vld [vmem:[#allocation2 + $0x16a] sm:$0xff]
        %v765 = vld [vmem:[#allocation2 + $0x172] sm:$0xff]
        %v766 = vld [vmem:[%s637] sm:$0xff]
        %v767 = vld [vmem:[%s637 + $0x8] sm:$0xff]
        %v768 = vld [vmem:[%s637 + $0x18] sm:$0xff]
        %v769 = vld [vmem:[%s637 + $0x20] sm:$0xff]
        %v770 = vld [vmem:[%s637 + $0x30] sm:$0xff]
        %v771 = vld [vmem:[%s637 + $0x38] sm:$0xff]
        %v772 = vld [vmem:[%s637 + $0x48] sm:$0xff]
        %v773 = vld [vmem:[%s637 + $0x50] sm:$0xff]
        %v774 = vld [vmem:[%s637 + $0x60] sm:$0xff]
        %v775 = vld [vmem:[%s637 + $0x68] sm:$0xff]
        %v776 = vld [vmem:[%s637 + $0x78] sm:$0xff]
        %v777 = vld [vmem:[%s637 + $0x80] sm:$0xff]
        %v778 = vld [vmem:[%s637 + $0x90] sm:$0xff]
        %v779 = vld [vmem:[%s637 + $0x98] sm:$0xff]
        %v780 = vld [vmem:[%s637 + $0xa8] sm:$0xff]
        %v781 = vld [vmem:[%s637 + $0xb0] sm:$0xff]
        %v782 = vld [vmem:[%s637 + $0xc0] sm:$0xff]
        %v783 = vld [vmem:[%s637 + $0xc8] sm:$0xff]
        %v784 = vld [vmem:[%s637 + $0xd8] sm:$0xff]
        %v785 = vld [vmem:[%s637 + $0xe0] sm:$0xff]
        %v786 = vld [vmem:[%s637 + $0xf0] sm:$0xff]
        %v787 = vld [vmem:[%s637 + $0xf8] sm:$0xff]
        %v788 = vld [vmem:[%s637 + $0x108] sm:$0xff]
        %v789 = vld [vmem:[%s637 + $0x110] sm:$0xff]
        %v790 = vld [vmem:[%s637 + $0x120] sm:$0xff]
        %v791 = vld [vmem:[%s637 + $0x128] sm:$0xff]
        %v792 = vld [vmem:[%s637 + $0x138] sm:$0xff]
        %v793 = vld [vmem:[%s637 + $0x140] sm:$0xff]
        %v794 = vld [vmem:[%s637 + $0x150] sm:$0xff]
        %v795 = vld [vmem:[%s637 + $0x158] sm:$0xff]
        %v796 = vld [vmem:[%s637 + $0x168] sm:$0xff]
        %v797 = vld [vmem:[%s637 + $0x170] sm:$0xff]
        %v798 = vld [vmem:[%s637 + $0x1] sm:$0xff]
        %v799 = vld [vmem:[%s637 + $0x9] sm:$0xff]
        %v800 = vld [vmem:[%s637 + $0x19] sm:$0xff]
        %v801 = vld [vmem:[%s637 + $0x21] sm:$0xff]
        %v802 = vld [vmem:[%s637 + $0x31] sm:$0xff]
        %v803 = vld [vmem:[%s637 + $0x39] sm:$0xff]
        %v804 = vld [vmem:[%s637 + $0x49] sm:$0xff]
        %v805 = vld [vmem:[%s637 + $0x51] sm:$0xff]
        %v806 = vld [vmem:[%s637 + $0x61] sm:$0xff]
        %v807 = vld [vmem:[%s637 + $0x69] sm:$0xff]
        %v808 = vld [vmem:[%s637 + $0x79] sm:$0xff]
        %v809 = vld [vmem:[%s637 + $0x81] sm:$0xff]
        %v810 = vld [vmem:[%s637 + $0x91] sm:$0xff]
        %v811 = vld [vmem:[%s637 + $0x99] sm:$0xff]
        %v812 = vld [vmem:[%s637 + $0xa9] sm:$0xff]
        %v813 = vld [vmem:[%s637 + $0xb1] sm:$0xff]
        %v814 = vld [vmem:[%s637 + $0xc1] sm:$0xff]
        %v815 = vld [vmem:[%s637 + $0xc9] sm:$0xff]
        %v816 = vld [vmem:[%s637 + $0xd9] sm:$0xff]
        %v817 = vld [vmem:[%s637 + $0xe1] sm:$0xff]
        %v818 = vld [vmem:[%s637 + $0xf1] sm:$0xff]
        %v819 = vld [vmem:[%s637 + $0xf9] sm:$0xff]
        %v820 = vld [vmem:[%s637 + $0x109] sm:$0xff]
        %v821 = vld [vmem:[%s637 + $0x111] sm:$0xff]
        %v822 = vld [vmem:[%s637 + $0x121] sm:$0xff]
        %v823 = vld [vmem:[%s637 + $0x129] sm:$0xff]
        %v824 = vld [vmem:[%s637 + $0x139] sm:$0xff]
        %v825 = vld [vmem:[%s637 + $0x141] sm:$0xff]
        %v826 = vld [vmem:[%s637 + $0x151] sm:$0xff]
        %v827 = vld [vmem:[%s637 + $0x159] sm:$0xff]
        %v828 = vld [vmem:[%s637 + $0x169] sm:$0xff]
        %v829 = vld [vmem:[%s637 + $0x171] sm:$0xff]
        %v830 = vld [vmem:[%s637 + $0x2] sm:$0xff]
        %v831 = vld [vmem:[%s637 + $0xa] sm:$0xff]
        %v832 = vld [vmem:[%s637 + $0x1a] sm:$0xff]
        %v833 = vld [vmem:[%s637 + $0x22] sm:$0xff]
        %v834 = vld [vmem:[%s637 + $0x32] sm:$0xff]
        %v835 = vld [vmem:[%s637 + $0x3a] sm:$0xff]
        %v836 = vld [vmem:[%s637 + $0x4a] sm:$0xff]
        %v837 = vld [vmem:[%s637 + $0x52] sm:$0xff]
        %v838 = vld [vmem:[%s637 + $0x62] sm:$0xff]
        %v839 = vld [vmem:[%s637 + $0x6a] sm:$0xff]
        %v840 = vld [vmem:[%s637 + $0x7a] sm:$0xff]
        %v841 = vld [vmem:[%s637 + $0x82] sm:$0xff]
        %v842 = vld [vmem:[%s637 + $0x92] sm:$0xff]
        %v843 = vld [vmem:[%s637 + $0x9a] sm:$0xff]
        %v844 = vld [vmem:[%s637 + $0xaa] sm:$0xff]
        %v845 = vld [vmem:[%s637 + $0xb2] sm:$0xff]
        %v846 = vld [vmem:[%s637 + $0xc2] sm:$0xff]
        %v847 = vld [vmem:[%s637 + $0xca] sm:$0xff]
        %v848 = vld [vmem:[%s637 + $0xda] sm:$0xff]
        %v849 = vld [vmem:[%s637 + $0xe2] sm:$0xff]
        %v850 = vld [vmem:[%s637 + $0xf2] sm:$0xff]
        %v851 = vld [vmem:[%s637 + $0xfa] sm:$0xff]
        %v852 = vld [vmem:[%s637 + $0x10a] sm:$0xff]
        %v853 = vld [vmem:[%s637 + $0x112] sm:$0xff]
        %v854 = vld [vmem:[%s637 + $0x122] sm:$0xff]
        %v855 = vld [vmem:[%s637 + $0x12a] sm:$0xff]
        %v856 = vld [vmem:[%s637 + $0x13a] sm:$0xff]
        %v857 = vld [vmem:[%s637 + $0x142] sm:$0xff]
        %v858 = vld [vmem:[%s637 + $0x152] sm:$0xff]
        %v859 = vld [vmem:[%s637 + $0x15a] sm:$0xff]
        %v860 = vld [vmem:[%s637 + $0x16a] sm:$0xff]
        %v861 = vld [vmem:[%s637 + $0x172] sm:$0xff]
        %s862 = scalar_lea.vmem [#allocation2], 48
        %v863 = vld [vmem:[%s862] sm:$0xff]
        %v864 = vld [vmem:[%s862 + $0x8] sm:$0xff]
        %v865 = vld [vmem:[%s862 + $0x18] sm:$0xff]
        %v866 = vld [vmem:[%s862 + $0x20] sm:$0xff]
        %v867 = vld [vmem:[%s862 + $0x30] sm:$0xff]
        %v868 = vld [vmem:[%s862 + $0x38] sm:$0xff]
        %v869 = vld [vmem:[%s862 + $0x48] sm:$0xff]
        %v870 = vld [vmem:[%s862 + $0x50] sm:$0xff]
        %v871 = vld [vmem:[%s862 + $0x60] sm:$0xff]
        %v872 = vld [vmem:[%s862 + $0x68] sm:$0xff]
        %v873 = vld [vmem:[%s862 + $0x78] sm:$0xff]
        %v874 = vld [vmem:[%s862 + $0x80] sm:$0xff]
        %v875 = vld [vmem:[%s862 + $0x90] sm:$0xff]
        %v876 = vld [vmem:[%s862 + $0x98] sm:$0xff]
        %v877 = vld [vmem:[%s862 + $0xa8] sm:$0xff]
        %v878 = vld [vmem:[%s862 + $0xb0] sm:$0xff]
        %v879 = vld [vmem:[%s862 + $0xc0] sm:$0xff]
        %v880 = vld [vmem:[%s862 + $0xc8] sm:$0xff]
        %v881 = vld [vmem:[%s862 + $0xd8] sm:$0xff]
        %v882 = vld [vmem:[%s862 + $0xe0] sm:$0xff]
        %v883 = vld [vmem:[%s862 + $0xf0] sm:$0xff]
        %v884 = vld [vmem:[%s862 + $0xf8] sm:$0xff]
        %v885 = vld [vmem:[%s862 + $0x108] sm:$0xff]
        %v886 = vld [vmem:[%s862 + $0x110] sm:$0xff]
        %v887 = vld [vmem:[%s862 + $0x120] sm:$0xff]
        %v888 = vld [vmem:[%s862 + $0x128] sm:$0xff]
        %v889 = vld [vmem:[%s862 + $0x138] sm:$0xff]
        %v890 = vld [vmem:[%s862 + $0x140] sm:$0xff]
        %v891 = vld [vmem:[%s862 + $0x150] sm:$0xff]
        %v892 = vld [vmem:[%s862 + $0x158] sm:$0xff]
        %v893 = vld [vmem:[%s862 + $0x168] sm:$0xff]
        %v894 = vld [vmem:[%s862 + $0x170] sm:$0xff]
        %v895 = vld [vmem:[%s862 + $0x1] sm:$0xff]
        %v896 = vld [vmem:[%s862 + $0x9] sm:$0xff]
        %v897 = vld [vmem:[%s862 + $0x19] sm:$0xff]
        %v898 = vld [vmem:[%s862 + $0x21] sm:$0xff]
        %v899 = vld [vmem:[%s862 + $0x31] sm:$0xff]
        %v900 = vld [vmem:[%s862 + $0x39] sm:$0xff]
        %v901 = vld [vmem:[%s862 + $0x49] sm:$0xff]
        %v902 = vld [vmem:[%s862 + $0x51] sm:$0xff]
        %v903 = vld [vmem:[%s862 + $0x61] sm:$0xff]
        %v904 = vld [vmem:[%s862 + $0x69] sm:$0xff]
        %v905 = vld [vmem:[%s862 + $0x79] sm:$0xff]
        %v906 = vld [vmem:[%s862 + $0x81] sm:$0xff]
        %v907 = vld [vmem:[%s862 + $0x91] sm:$0xff]
        %v908 = vld [vmem:[%s862 + $0x99] sm:$0xff]
        %v909 = vld [vmem:[%s862 + $0xa9] sm:$0xff]
        %v910 = vld [vmem:[%s862 + $0xb1] sm:$0xff]
        %v911 = vld [vmem:[%s862 + $0xc1] sm:$0xff]
        %v912 = vld [vmem:[%s862 + $0xc9] sm:$0xff]
        %v913 = vld [vmem:[%s862 + $0xd9] sm:$0xff]
        %v914 = vld [vmem:[%s862 + $0xe1] sm:$0xff]
        %v915 = vld [vmem:[%s862 + $0xf1] sm:$0xff]
        %v916 = vld [vmem:[%s862 + $0xf9] sm:$0xff]
        %v917 = vld [vmem:[%s862 + $0x109] sm:$0xff]
        %v918 = vld [vmem:[%s862 + $0x111] sm:$0xff]
        %v919 = vld [vmem:[%s862 + $0x121] sm:$0xff]
        %v920 = vld [vmem:[%s862 + $0x129] sm:$0xff]
        %v921 = vld [vmem:[%s862 + $0x139] sm:$0xff]
        %v922 = vld [vmem:[%s862 + $0x141] sm:$0xff]
        %v923 = vld [vmem:[%s862 + $0x151] sm:$0xff]
        %v924 = vld [vmem:[%s862 + $0x159] sm:$0xff]
        %v925 = vld [vmem:[%s862 + $0x169] sm:$0xff]
        %v926 = vld [vmem:[%s862 + $0x171] sm:$0xff]
        %v927 = vld [vmem:[%s862 + $0x2] sm:$0xff]
        %v928 = vld [vmem:[%s862 + $0xa] sm:$0xff]
        %v929 = vld [vmem:[%s862 + $0x1a] sm:$0xff]
        %v930 = vld [vmem:[%s862 + $0x22] sm:$0xff]
        %v931 = vld [vmem:[%s862 + $0x32] sm:$0xff]
        %v932 = vld [vmem:[%s862 + $0x3a] sm:$0xff]
        %v933 = vld [vmem:[%s862 + $0x4a] sm:$0xff]
        %v934 = vld [vmem:[%s862 + $0x52] sm:$0xff]
        %v935 = vld [vmem:[%s862 + $0x62] sm:$0xff]
        %v936 = vld [vmem:[%s862 + $0x6a] sm:$0xff]
        %v937 = vld [vmem:[%s862 + $0x7a] sm:$0xff]
        %v938 = vld [vmem:[%s862 + $0x82] sm:$0xff]
        %v939 = vld [vmem:[%s862 + $0x92] sm:$0xff]
        %v940 = vld [vmem:[%s862 + $0x9a] sm:$0xff]
        %v941 = vld [vmem:[%s862 + $0xaa] sm:$0xff]
        %v942 = vld [vmem:[%s862 + $0xb2] sm:$0xff]
        %v943 = vld [vmem:[%s862 + $0xc2] sm:$0xff]
        %v944 = vld [vmem:[%s862 + $0xca] sm:$0xff]
        %v945 = vld [vmem:[%s862 + $0xda] sm:$0xff]
        %v946 = vld [vmem:[%s862 + $0xe2] sm:$0xff]
        %v947 = vld [vmem:[%s862 + $0xf2] sm:$0xff]
        %v948 = vld [vmem:[%s862 + $0xfa] sm:$0xff]
        %v949 = vld [vmem:[%s862 + $0x10a] sm:$0xff]
        %v950 = vld [vmem:[%s862 + $0x112] sm:$0xff]
        %v951 = vld [vmem:[%s862 + $0x122] sm:$0xff]
        %v952 = vld [vmem:[%s862 + $0x12a] sm:$0xff]
        %v953 = vld [vmem:[%s862 + $0x13a] sm:$0xff]
        %v954 = vld [vmem:[%s862 + $0x142] sm:$0xff]
        %v955 = vld [vmem:[%s862 + $0x152] sm:$0xff]
        %v956 = vld [vmem:[%s862 + $0x15a] sm:$0xff]
        %v957 = vld [vmem:[%s862 + $0x16a] sm:$0xff]
        %v958 = vld [vmem:[%s862 + $0x172] sm:$0xff]
        %991 = vrot.lane.b32.xlu0 %v702, 32
        %v992 = vpop.permute.xlu0 %991
        %993 = vrot.lane.b32.xlu0 %v703, 32
        %v994 = vpop.permute.xlu0 %993
        %995 = vrot.lane.b32.xlu0 %v704, 32
        %v996 = vpop.permute.xlu0 %995
        %997 = vrot.lane.b32.xlu0 %v705, 32
        %v998 = vpop.permute.xlu0 %997
        %999 = vrot.lane.b32.xlu0 %v706, 32
        %v1000 = vpop.permute.xlu0 %999
        %1001 = vrot.lane.b32.xlu0 %v707, 32
        %v1002 = vpop.permute.xlu0 %1001
        %1003 = vrot.lane.b32.xlu0 %v708, 32
        %v1004 = vpop.permute.xlu0 %1003
        %1005 = vrot.lane.b32.xlu0 %v709, 32
        %v1006 = vpop.permute.xlu0 %1005
        %1007 = vrot.lane.b32.xlu0 %v710, 32
        %v1008 = vpop.permute.xlu0 %1007
        %1009 = vrot.lane.b32.xlu0 %v711, 32
        %v1010 = vpop.permute.xlu0 %1009
        %1011 = vrot.lane.b32.xlu0 %v712, 32
        %v1012 = vpop.permute.xlu0 %1011
        %1013 = vrot.lane.b32.xlu0 %v713, 32
        %v1014 = vpop.permute.xlu0 %1013
        %1015 = vrot.lane.b32.xlu0 %v714, 32
        %v1016 = vpop.permute.xlu0 %1015
        %1017 = vrot.lane.b32.xlu0 %v715, 32
        %v1018 = vpop.permute.xlu0 %1017
        %1019 = vrot.lane.b32.xlu0 %v716, 32
        %v1020 = vpop.permute.xlu0 %1019
        %1021 = vrot.lane.b32.xlu0 %v717, 32
        %v1022 = vpop.permute.xlu0 %1021
        %1023 = vrot.lane.b32.xlu0 %v718, 32
        %v1024 = vpop.permute.xlu0 %1023
        %1025 = vrot.lane.b32.xlu0 %v719, 32
        %v1026 = vpop.permute.xlu0 %1025
        %1027 = vrot.lane.b32.xlu0 %v720, 32
        %v1028 = vpop.permute.xlu0 %1027
        %1029 = vrot.lane.b32.xlu0 %v721, 32
        %v1030 = vpop.permute.xlu0 %1029
        %1031 = vrot.lane.b32.xlu0 %v722, 32
        %v1032 = vpop.permute.xlu0 %1031
        %1033 = vrot.lane.b32.xlu0 %v723, 32
        %v1034 = vpop.permute.xlu0 %1033
        %1035 = vrot.lane.b32.xlu0 %v724, 32
        %v1036 = vpop.permute.xlu0 %1035
        %1037 = vrot.lane.b32.xlu0 %v725, 32
        %v1038 = vpop.permute.xlu0 %1037
        %1039 = vrot.lane.b32.xlu0 %v726, 32
        %v1040 = vpop.permute.xlu0 %1039
        %1041 = vrot.lane.b32.xlu0 %v727, 32
        %v1042 = vpop.permute.xlu0 %1041
        %1043 = vrot.lane.b32.xlu0 %v728, 32
        %v1044 = vpop.permute.xlu0 %1043
        %1045 = vrot.lane.b32.xlu0 %v729, 32
        %v1046 = vpop.permute.xlu0 %1045
        %1047 = vrot.lane.b32.xlu0 %v730, 32
        %v1048 = vpop.permute.xlu0 %1047
        %1049 = vrot.lane.b32.xlu0 %v731, 32
        %v1050 = vpop.permute.xlu0 %1049
        %1051 = vrot.lane.b32.xlu0 %v732, 32
        %v1052 = vpop.permute.xlu0 %1051
        %1053 = vrot.lane.b32.xlu0 %v733, 32
        %v1054 = vpop.permute.xlu0 %1053
        %1119 = vrot.lane.b32.xlu0 %v734, 64
        %v1120 = vpop.permute.xlu0 %1119
        %1121 = vrot.lane.b32.xlu0 %v735, 64
        %v1122 = vpop.permute.xlu0 %1121
        %1123 = vrot.lane.b32.xlu0 %v736, 64
        %v1124 = vpop.permute.xlu0 %1123
        %1125 = vrot.lane.b32.xlu0 %v737, 64
        %v1126 = vpop.permute.xlu0 %1125
        %1127 = vrot.lane.b32.xlu0 %v738, 64
        %v1128 = vpop.permute.xlu0 %1127
        %1129 = vrot.lane.b32.xlu0 %v739, 64
        %v1130 = vpop.permute.xlu0 %1129
        %1131 = vrot.lane.b32.xlu0 %v740, 64
        %v1132 = vpop.permute.xlu0 %1131
        %1133 = vrot.lane.b32.xlu0 %v741, 64
        %v1134 = vpop.permute.xlu0 %1133
        %1135 = vrot.lane.b32.xlu0 %v742, 64
        %v1136 = vpop.permute.xlu0 %1135
        %1137 = vrot.lane.b32.xlu0 %v743, 64
        %v1138 = vpop.permute.xlu0 %1137
        %1139 = vrot.lane.b32.xlu0 %v744, 64
        %v1140 = vpop.permute.xlu0 %1139
        %1141 = vrot.lane.b32.xlu0 %v745, 64
        %v1142 = vpop.permute.xlu0 %1141
        %1143 = vrot.lane.b32.xlu0 %v746, 64
        %v1144 = vpop.permute.xlu0 %1143
        %1145 = vrot.lane.b32.xlu0 %v747, 64
        %v1146 = vpop.permute.xlu0 %1145
        %1147 = vrot.lane.b32.xlu0 %v748, 64
        %v1148 = vpop.permute.xlu0 %1147
        %1149 = vrot.lane.b32.xlu0 %v749, 64
        %v1150 = vpop.permute.xlu0 %1149
        %1151 = vrot.lane.b32.xlu0 %v750, 64
        %v1152 = vpop.permute.xlu0 %1151
        %1153 = vrot.lane.b32.xlu0 %v751, 64
        %v1154 = vpop.permute.xlu0 %1153
        %1155 = vrot.lane.b32.xlu0 %v752, 64
        %v1156 = vpop.permute.xlu0 %1155
        %1157 = vrot.lane.b32.xlu0 %v753, 64
        %v1158 = vpop.permute.xlu0 %1157
        %1159 = vrot.lane.b32.xlu0 %v754, 64
        %v1160 = vpop.permute.xlu0 %1159
        %1161 = vrot.lane.b32.xlu0 %v755, 64
        %v1162 = vpop.permute.xlu0 %1161
        %1163 = vrot.lane.b32.xlu0 %v756, 64
        %v1164 = vpop.permute.xlu0 %1163
        %1165 = vrot.lane.b32.xlu0 %v757, 64
        %v1166 = vpop.permute.xlu0 %1165
        %1167 = vrot.lane.b32.xlu0 %v758, 64
        %v1168 = vpop.permute.xlu0 %1167
        %1169 = vrot.lane.b32.xlu0 %v759, 64
        %v1170 = vpop.permute.xlu0 %1169
        %1171 = vrot.lane.b32.xlu0 %v760, 64
        %v1172 = vpop.permute.xlu0 %1171
        %1173 = vrot.lane.b32.xlu0 %v761, 64
        %v1174 = vpop.permute.xlu0 %1173
        %1175 = vrot.lane.b32.xlu0 %v762, 64
        %v1176 = vpop.permute.xlu0 %1175
        %1177 = vrot.lane.b32.xlu0 %v763, 64
        %v1178 = vpop.permute.xlu0 %1177
        %1179 = vrot.lane.b32.xlu0 %v764, 64
        %v1180 = vpop.permute.xlu0 %1179
        %1181 = vrot.lane.b32.xlu0 %v765, 64
        %v1182 = vpop.permute.xlu0 %1181
        %1247 = vrot.lane.b32.xlu0 %v766, 96
        %v1248 = vpop.permute.xlu0 %1247
        %1249 = vrot.lane.b32.xlu0 %v767, 96
        %v1250 = vpop.permute.xlu0 %1249
        %1251 = vrot.lane.b32.xlu0 %v768, 96
        %v1252 = vpop.permute.xlu0 %1251
        %1253 = vrot.lane.b32.xlu0 %v769, 96
        %v1254 = vpop.permute.xlu0 %1253
        %1255 = vrot.lane.b32.xlu0 %v770, 96
        %v1256 = vpop.permute.xlu0 %1255
        %1257 = vrot.lane.b32.xlu0 %v771, 96
        %v1258 = vpop.permute.xlu0 %1257
        %1259 = vrot.lane.b32.xlu0 %v772, 96
        %v1260 = vpop.permute.xlu0 %1259
        %1261 = vrot.lane.b32.xlu0 %v773, 96
        %v1262 = vpop.permute.xlu0 %1261
        %1263 = vrot.lane.b32.xlu0 %v774, 96
        %v1264 = vpop.permute.xlu0 %1263
        %1265 = vrot.lane.b32.xlu0 %v775, 96
        %v1266 = vpop.permute.xlu0 %1265
        %1267 = vrot.lane.b32.xlu0 %v776, 96
        %v1268 = vpop.permute.xlu0 %1267
        %1269 = vrot.lane.b32.xlu0 %v777, 96
        %v1270 = vpop.permute.xlu0 %1269
        %1271 = vrot.lane.b32.xlu0 %v778, 96
        %v1272 = vpop.permute.xlu0 %1271
        %1273 = vrot.lane.b32.xlu0 %v779, 96
        %v1274 = vpop.permute.xlu0 %1273
        %1275 = vrot.lane.b32.xlu0 %v780, 96
        %v1276 = vpop.permute.xlu0 %1275
        %1277 = vrot.lane.b32.xlu0 %v781, 96
        %v1278 = vpop.permute.xlu0 %1277
        %1279 = vrot.lane.b32.xlu0 %v782, 96
        %v1280 = vpop.permute.xlu0 %1279
        %1281 = vrot.lane.b32.xlu0 %v783, 96
        %v1282 = vpop.permute.xlu0 %1281
        %1283 = vrot.lane.b32.xlu0 %v784, 96
        %v1284 = vpop.permute.xlu0 %1283
        %1285 = vrot.lane.b32.xlu0 %v785, 96
        %v1286 = vpop.permute.xlu0 %1285
        %1287 = vrot.lane.b32.xlu0 %v786, 96
        %v1288 = vpop.permute.xlu0 %1287
        %1289 = vrot.lane.b32.xlu0 %v787, 96
        %v1290 = vpop.permute.xlu0 %1289
        %1291 = vrot.lane.b32.xlu0 %v788, 96
        %v1292 = vpop.permute.xlu0 %1291
        %1293 = vrot.lane.b32.xlu0 %v789, 96
        %v1294 = vpop.permute.xlu0 %1293
        %1295 = vrot.lane.b32.xlu0 %v790, 96
        %v1296 = vpop.permute.xlu0 %1295
        %1297 = vrot.lane.b32.xlu0 %v791, 96
        %v1298 = vpop.permute.xlu0 %1297
        %1299 = vrot.lane.b32.xlu0 %v792, 96
        %v1300 = vpop.permute.xlu0 %1299
        %1301 = vrot.lane.b32.xlu0 %v793, 96
        %v1302 = vpop.permute.xlu0 %1301
        %1303 = vrot.lane.b32.xlu0 %v794, 96
        %v1304 = vpop.permute.xlu0 %1303
        %1305 = vrot.lane.b32.xlu0 %v795, 96
        %v1306 = vpop.permute.xlu0 %1305
        %1307 = vrot.lane.b32.xlu0 %v796, 96
        %v1308 = vpop.permute.xlu0 %1307
        %1309 = vrot.lane.b32.xlu0 %v797, 96
        %v1310 = vpop.permute.xlu0 %1309
        %1375 = vrot.lane.b32.xlu0 %v830, 32
        %v1376 = vpop.permute.xlu0 %1375
        %1377 = vrot.lane.b32.xlu0 %v831, 32
        %v1378 = vpop.permute.xlu0 %1377
        %1379 = vrot.lane.b32.xlu0 %v832, 32
        %v1380 = vpop.permute.xlu0 %1379
        %1381 = vrot.lane.b32.xlu0 %v833, 32
        %v1382 = vpop.permute.xlu0 %1381
        %1383 = vrot.lane.b32.xlu0 %v834, 32
        %v1384 = vpop.permute.xlu0 %1383
        %1385 = vrot.lane.b32.xlu0 %v835, 32
        %v1386 = vpop.permute.xlu0 %1385
        %1387 = vrot.lane.b32.xlu0 %v836, 32
        %v1388 = vpop.permute.xlu0 %1387
        %1389 = vrot.lane.b32.xlu0 %v837, 32
        %v1390 = vpop.permute.xlu0 %1389
        %1391 = vrot.lane.b32.xlu0 %v838, 32
        %v1392 = vpop.permute.xlu0 %1391
        %1393 = vrot.lane.b32.xlu0 %v839, 32
        %v1394 = vpop.permute.xlu0 %1393
        %1395 = vrot.lane.b32.xlu0 %v840, 32
        %v1396 = vpop.permute.xlu0 %1395
        %1397 = vrot.lane.b32.xlu0 %v841, 32
        %v1398 = vpop.permute.xlu0 %1397
        %1399 = vrot.lane.b32.xlu0 %v842, 32
        %v1400 = vpop.permute.xlu0 %1399
        %1401 = vrot.lane.b32.xlu0 %v843, 32
        %v1402 = vpop.permute.xlu0 %1401
        %1403 = vrot.lane.b32.xlu0 %v844, 32
        %v1404 = vpop.permute.xlu0 %1403
        %1405 = vrot.lane.b32.xlu0 %v845, 32
        %v1406 = vpop.permute.xlu0 %1405
        %1407 = vrot.lane.b32.xlu0 %v846, 32
        %v1408 = vpop.permute.xlu0 %1407
        %1409 = vrot.lane.b32.xlu0 %v847, 32
        %v1410 = vpop.permute.xlu0 %1409
        %1411 = vrot.lane.b32.xlu0 %v848, 32
        %v1412 = vpop.permute.xlu0 %1411
        %1413 = vrot.lane.b32.xlu0 %v849, 32
        %v1414 = vpop.permute.xlu0 %1413
        %1415 = vrot.lane.b32.xlu0 %v850, 32
        %v1416 = vpop.permute.xlu0 %1415
        %1417 = vrot.lane.b32.xlu0 %v851, 32
        %v1418 = vpop.permute.xlu0 %1417
        %1419 = vrot.lane.b32.xlu0 %v852, 32
        %v1420 = vpop.permute.xlu0 %1419
        %1421 = vrot.lane.b32.xlu0 %v853, 32
        %v1422 = vpop.permute.xlu0 %1421
        %1423 = vrot.lane.b32.xlu0 %v854, 32
        %v1424 = vpop.permute.xlu0 %1423
        %1425 = vrot.lane.b32.xlu0 %v855, 32
        %v1426 = vpop.permute.xlu0 %1425
        %1427 = vrot.lane.b32.xlu0 %v856, 32
        %v1428 = vpop.permute.xlu0 %1427
        %1429 = vrot.lane.b32.xlu0 %v857, 32
        %v1430 = vpop.permute.xlu0 %1429
        %1431 = vrot.lane.b32.xlu0 %v858, 32
        %v1432 = vpop.permute.xlu0 %1431
        %1433 = vrot.lane.b32.xlu0 %v859, 32
        %v1434 = vpop.permute.xlu0 %1433
        %1435 = vrot.lane.b32.xlu0 %v860, 32
        %v1436 = vpop.permute.xlu0 %1435
        %1437 = vrot.lane.b32.xlu0 %v861, 32
        %v1438 = vpop.permute.xlu0 %1437
        %1503 = vrot.lane.b32.xlu0 %v863, 64
        %v1504 = vpop.permute.xlu0 %1503
        %1505 = vrot.lane.b32.xlu0 %v864, 64
        %v1506 = vpop.permute.xlu0 %1505
        %1507 = vrot.lane.b32.xlu0 %v865, 64
        %v1508 = vpop.permute.xlu0 %1507
        %1509 = vrot.lane.b32.xlu0 %v866, 64
        %v1510 = vpop.permute.xlu0 %1509
        %1511 = vrot.lane.b32.xlu0 %v867, 64
        %v1512 = vpop.permute.xlu0 %1511
        %1513 = vrot.lane.b32.xlu0 %v868, 64
        %v1514 = vpop.permute.xlu0 %1513
        %1515 = vrot.lane.b32.xlu0 %v869, 64
        %v1516 = vpop.permute.xlu0 %1515
        %1517 = vrot.lane.b32.xlu0 %v870, 64
        %v1518 = vpop.permute.xlu0 %1517
        %1519 = vrot.lane.b32.xlu0 %v871, 64
        %v1520 = vpop.permute.xlu0 %1519
        %1521 = vrot.lane.b32.xlu0 %v872, 64
        %v1522 = vpop.permute.xlu0 %1521
        %1523 = vrot.lane.b32.xlu0 %v873, 64
        %v1524 = vpop.permute.xlu0 %1523
        %1525 = vrot.lane.b32.xlu0 %v874, 64
        %v1526 = vpop.permute.xlu0 %1525
        %1527 = vrot.lane.b32.xlu0 %v875, 64
        %v1528 = vpop.permute.xlu0 %1527
        %1529 = vrot.lane.b32.xlu0 %v876, 64
        %v1530 = vpop.permute.xlu0 %1529
        %1531 = vrot.lane.b32.xlu0 %v877, 64
        %v1532 = vpop.permute.xlu0 %1531
        %1533 = vrot.lane.b32.xlu0 %v878, 64
        %v1534 = vpop.permute.xlu0 %1533
        %1535 = vrot.lane.b32.xlu0 %v879, 64
        %v1536 = vpop.permute.xlu0 %1535
        %1537 = vrot.lane.b32.xlu0 %v880, 64
        %v1538 = vpop.permute.xlu0 %1537
        %1539 = vrot.lane.b32.xlu0 %v881, 64
        %v1540 = vpop.permute.xlu0 %1539
        %1541 = vrot.lane.b32.xlu0 %v882, 64
        %v1542 = vpop.permute.xlu0 %1541
        %1543 = vrot.lane.b32.xlu0 %v883, 64
        %v1544 = vpop.permute.xlu0 %1543
        %1545 = vrot.lane.b32.xlu0 %v884, 64
        %v1546 = vpop.permute.xlu0 %1545
        %1547 = vrot.lane.b32.xlu0 %v885, 64
        %v1548 = vpop.permute.xlu0 %1547
        %1549 = vrot.lane.b32.xlu0 %v886, 64
        %v1550 = vpop.permute.xlu0 %1549
        %1551 = vrot.lane.b32.xlu0 %v887, 64
        %v1552 = vpop.permute.xlu0 %1551
        %1553 = vrot.lane.b32.xlu0 %v888, 64
        %v1554 = vpop.permute.xlu0 %1553
        %1555 = vrot.lane.b32.xlu0 %v889, 64
        %v1556 = vpop.permute.xlu0 %1555
        %1557 = vrot.lane.b32.xlu0 %v890, 64
        %v1558 = vpop.permute.xlu0 %1557
        %1559 = vrot.lane.b32.xlu0 %v891, 64
        %v1560 = vpop.permute.xlu0 %1559
        %1561 = vrot.lane.b32.xlu0 %v892, 64
        %v1562 = vpop.permute.xlu0 %1561
        %1563 = vrot.lane.b32.xlu0 %v893, 64
        %v1564 = vpop.permute.xlu0 %1563
        %1565 = vrot.lane.b32.xlu0 %v894, 64
        %v1566 = vpop.permute.xlu0 %1565
        %1631 = vrot.lane.b32.xlu0 %v895, 96
        %v1632 = vpop.permute.xlu0 %1631
        %1633 = vrot.lane.b32.xlu0 %v896, 96
        %v1634 = vpop.permute.xlu0 %1633
        %1635 = vrot.lane.b32.xlu0 %v897, 96
        %v1636 = vpop.permute.xlu0 %1635
        %1637 = vrot.lane.b32.xlu0 %v898, 96
        %v1638 = vpop.permute.xlu0 %1637
        %1639 = vrot.lane.b32.xlu0 %v899, 96
        %v1640 = vpop.permute.xlu0 %1639
        %1641 = vrot.lane.b32.xlu0 %v900, 96
        %v1642 = vpop.permute.xlu0 %1641
        %1643 = vrot.lane.b32.xlu0 %v901, 96
        %v1644 = vpop.permute.xlu0 %1643
        %1645 = vrot.lane.b32.xlu0 %v902, 96
        %v1646 = vpop.permute.xlu0 %1645
        %1647 = vrot.lane.b32.xlu0 %v903, 96
        %v1648 = vpop.permute.xlu0 %1647
        %1649 = vrot.lane.b32.xlu0 %v904, 96
        %v1650 = vpop.permute.xlu0 %1649
        %1651 = vrot.lane.b32.xlu0 %v905, 96
        %v1652 = vpop.permute.xlu0 %1651
        %1653 = vrot.lane.b32.xlu0 %v906, 96
        %v1654 = vpop.permute.xlu0 %1653
        %1655 = vrot.lane.b32.xlu0 %v907, 96
        %v1656 = vpop.permute.xlu0 %1655
        %1657 = vrot.lane.b32.xlu0 %v908, 96
        %v1658 = vpop.permute.xlu0 %1657
        %1659 = vrot.lane.b32.xlu0 %v909, 96
        %v1660 = vpop.permute.xlu0 %1659
        %1661 = vrot.lane.b32.xlu0 %v910, 96
        %v1662 = vpop.permute.xlu0 %1661
        %1663 = vrot.lane.b32.xlu0 %v911, 96
        %v1664 = vpop.permute.xlu0 %1663
        %1665 = vrot.lane.b32.xlu0 %v912, 96
        %v1666 = vpop.permute.xlu0 %1665
        %1667 = vrot.lane.b32.xlu0 %v913, 96
        %v1668 = vpop.permute.xlu0 %1667
        %1669 = vrot.lane.b32.xlu0 %v914, 96
        %v1670 = vpop.permute.xlu0 %1669
        %1671 = vrot.lane.b32.xlu0 %v915, 96
        %v1672 = vpop.permute.xlu0 %1671
        %1673 = vrot.lane.b32.xlu0 %v916, 96
        %v1674 = vpop.permute.xlu0 %1673
        %1675 = vrot.lane.b32.xlu0 %v917, 96
        %v1676 = vpop.permute.xlu0 %1675
        %1677 = vrot.lane.b32.xlu0 %v918, 96
        %v1678 = vpop.permute.xlu0 %1677
        %1679 = vrot.lane.b32.xlu0 %v919, 96
        %v1680 = vpop.permute.xlu0 %1679
        %1681 = vrot.lane.b32.xlu0 %v920, 96
        %v1682 = vpop.permute.xlu0 %1681
        %1683 = vrot.lane.b32.xlu0 %v921, 96
        %v1684 = vpop.permute.xlu0 %1683
        %1685 = vrot.lane.b32.xlu0 %v922, 96
        %v1686 = vpop.permute.xlu0 %1685
        %1687 = vrot.lane.b32.xlu0 %v923, 96
        %v1688 = vpop.permute.xlu0 %1687
        %1689 = vrot.lane.b32.xlu0 %v924, 96
        %v1690 = vpop.permute.xlu0 %1689
        %1691 = vrot.lane.b32.xlu0 %v925, 96
        %v1692 = vpop.permute.xlu0 %1691
        %1693 = vrot.lane.b32.xlu0 %v926, 96
        %v1694 = vpop.permute.xlu0 %1693
        %v1727 = vsel %vm582, %v670, %v992
        %v1728 = vsel %vm582, %v671, %v994
        %v1729 = vsel %vm582, %v672, %v996
        %v1730 = vsel %vm582, %v673, %v998
        %v1731 = vsel %vm582, %v674, %v1000
        %v1732 = vsel %vm582, %v675, %v1002
        %v1733 = vsel %vm582, %v676, %v1004
        %v1734 = vsel %vm582, %v677, %v1006
        %v1735 = vsel %vm582, %v678, %v1008
        %v1736 = vsel %vm582, %v679, %v1010
        %v1737 = vsel %vm582, %v680, %v1012
        %v1738 = vsel %vm582, %v681, %v1014
        %v1739 = vsel %vm582, %v682, %v1016
        %v1740 = vsel %vm582, %v683, %v1018
        %v1741 = vsel %vm582, %v684, %v1020
        %v1742 = vsel %vm582, %v685, %v1022
        %v1743 = vsel %vm582, %v686, %v1024
        %v1744 = vsel %vm582, %v687, %v1026
        %v1745 = vsel %vm582, %v688, %v1028
        %v1746 = vsel %vm582, %v689, %v1030
        %v1747 = vsel %vm582, %v690, %v1032
        %v1748 = vsel %vm582, %v691, %v1034
        %v1749 = vsel %vm582, %v692, %v1036
        %v1750 = vsel %vm582, %v693, %v1038
        %v1751 = vsel %vm582, %v694, %v1040
        %v1752 = vsel %vm582, %v695, %v1042
        %v1753 = vsel %vm582, %v696, %v1044
        %v1754 = vsel %vm582, %v697, %v1046
        %v1755 = vsel %vm582, %v698, %v1048
        %v1756 = vsel %vm582, %v699, %v1050
        %v1757 = vsel %vm582, %v700, %v1052
        %v1758 = vsel %vm582, %v701, %v1054
        %vm1759 = vcmask 523264
        %v1760 = vsel %vm1759, %v1727, %v1120
        %v1761 = vsel %vm1759, %v1728, %v1122
        %v1762 = vsel %vm1759, %v1729, %v1124
        %v1763 = vsel %vm1759, %v1730, %v1126
        %v1764 = vsel %vm1759, %v1731, %v1128
        %v1765 = vsel %vm1759, %v1732, %v1130
        %v1766 = vsel %vm1759, %v1733, %v1132
        %v1767 = vsel %vm1759, %v1734, %v1134
        %v1768 = vsel %vm1759, %v1735, %v1136
        %v1769 = vsel %vm1759, %v1736, %v1138
        %v1770 = vsel %vm1759, %v1737, %v1140
        %v1771 = vsel %vm1759, %v1738, %v1142
        %v1772 = vsel %vm1759, %v1739, %v1144
        %v1773 = vsel %vm1759, %v1740, %v1146
        %v1774 = vsel %vm1759, %v1741, %v1148
        %v1775 = vsel %vm1759, %v1742, %v1150
        %v1776 = vsel %vm1759, %v1743, %v1152
        %v1777 = vsel %vm1759, %v1744, %v1154
        %v1778 = vsel %vm1759, %v1745, %v1156
        %v1779 = vsel %vm1759, %v1746, %v1158
        %v1780 = vsel %vm1759, %v1747, %v1160
        %v1781 = vsel %vm1759, %v1748, %v1162
        %v1782 = vsel %vm1759, %v1749, %v1164
        %v1783 = vsel %vm1759, %v1750, %v1166
        %v1784 = vsel %vm1759, %v1751, %v1168
        %v1785 = vsel %vm1759, %v1752, %v1170
        %v1786 = vsel %vm1759, %v1753, %v1172
        %v1787 = vsel %vm1759, %v1754, %v1174
        %v1788 = vsel %vm1759, %v1755, %v1176
        %v1789 = vsel %vm1759, %v1756, %v1178
        %v1790 = vsel %vm1759, %v1757, %v1180
        %v1791 = vsel %vm1759, %v1758, %v1182
        %vm1792 = vcmask 785408
        %v1793 = vsel %vm1792, %v1760, %v1248
        %v1794 = vsel %vm1792, %v1761, %v1250
        %v1795 = vsel %vm1792, %v1762, %v1252
        %v1796 = vsel %vm1792, %v1763, %v1254
        %v1797 = vsel %vm1792, %v1764, %v1256
        %v1798 = vsel %vm1792, %v1765, %v1258
        %v1799 = vsel %vm1792, %v1766, %v1260
        %v1800 = vsel %vm1792, %v1767, %v1262
        %v1801 = vsel %vm1792, %v1768, %v1264
        %v1802 = vsel %vm1792, %v1769, %v1266
        %v1803 = vsel %vm1792, %v1770, %v1268
        %v1804 = vsel %vm1792, %v1771, %v1270
        %v1805 = vsel %vm1792, %v1772, %v1272
        %v1806 = vsel %vm1792, %v1773, %v1274
        %v1807 = vsel %vm1792, %v1774, %v1276
        %v1808 = vsel %vm1792, %v1775, %v1278
        %v1809 = vsel %vm1792, %v1776, %v1280
        %v1810 = vsel %vm1792, %v1777, %v1282
        %v1811 = vsel %vm1792, %v1778, %v1284
        %v1812 = vsel %vm1792, %v1779, %v1286
        %v1813 = vsel %vm1792, %v1780, %v1288
        %v1814 = vsel %vm1792, %v1781, %v1290
        %v1815 = vsel %vm1792, %v1782, %v1292
        %v1816 = vsel %vm1792, %v1783, %v1294
        %v1817 = vsel %vm1792, %v1784, %v1296
        %v1818 = vsel %vm1792, %v1785, %v1298
        %v1819 = vsel %vm1792, %v1786, %v1300
        %v1820 = vsel %vm1792, %v1787, %v1302
        %v1821 = vsel %vm1792, %v1788, %v1304
        %v1822 = vsel %vm1792, %v1789, %v1306
        %v1823 = vsel %vm1792, %v1790, %v1308
        %v1824 = vsel %vm1792, %v1791, %v1310
        %v1825 = vsel %vm582, %v798, %v1376
        %v1826 = vsel %vm582, %v799, %v1378
        %v1827 = vsel %vm582, %v800, %v1380
        %v1828 = vsel %vm582, %v801, %v1382
        %v1829 = vsel %vm582, %v802, %v1384
        %v1830 = vsel %vm582, %v803, %v1386
        %v1831 = vsel %vm582, %v804, %v1388
        %v1832 = vsel %vm582, %v805, %v1390
        %v1833 = vsel %vm582, %v806, %v1392
        %v1834 = vsel %vm582, %v807, %v1394
        %v1835 = vsel %vm582, %v808, %v1396
        %v1836 = vsel %vm582, %v809, %v1398
        %v1837 = vsel %vm582, %v810, %v1400
        %v1838 = vsel %vm582, %v811, %v1402
        %v1839 = vsel %vm582, %v812, %v1404
        %v1840 = vsel %vm582, %v813, %v1406
        %v1841 = vsel %vm582, %v814, %v1408
        %v1842 = vsel %vm582, %v815, %v1410
        %v1843 = vsel %vm582, %v816, %v1412
        %v1844 = vsel %vm582, %v817, %v1414
        %v1845 = vsel %vm582, %v818, %v1416
        %v1846 = vsel %vm582, %v819, %v1418
        %v1847 = vsel %vm582, %v820, %v1420
        %v1848 = vsel %vm582, %v821, %v1422
        %v1849 = vsel %vm582, %v822, %v1424
        %v1850 = vsel %vm582, %v823, %v1426
        %v1851 = vsel %vm582, %v824, %v1428
        %v1852 = vsel %vm582, %v825, %v1430
        %v1853 = vsel %vm582, %v826, %v1432
        %v1854 = vsel %vm582, %v827, %v1434
        %v1855 = vsel %vm582, %v828, %v1436
        %v1856 = vsel %vm582, %v829, %v1438
        %v1857 = vsel %vm1759, %v1825, %v1504
        %v1858 = vsel %vm1759, %v1826, %v1506
        %v1859 = vsel %vm1759, %v1827, %v1508
        %v1860 = vsel %vm1759, %v1828, %v1510
        %v1861 = vsel %vm1759, %v1829, %v1512
        %v1862 = vsel %vm1759, %v1830, %v1514
        %v1863 = vsel %vm1759, %v1831, %v1516
        %v1864 = vsel %vm1759, %v1832, %v1518
        %v1865 = vsel %vm1759, %v1833, %v1520
        %v1866 = vsel %vm1759, %v1834, %v1522
        %v1867 = vsel %vm1759, %v1835, %v1524
        %v1868 = vsel %vm1759, %v1836, %v1526
        %v1869 = vsel %vm1759, %v1837, %v1528
        %v1870 = vsel %vm1759, %v1838, %v1530
        %v1871 = vsel %vm1759, %v1839, %v1532
        %v1872 = vsel %vm1759, %v1840, %v1534
        %v1873 = vsel %vm1759, %v1841, %v1536
        %v1874 = vsel %vm1759, %v1842, %v1538
        %v1875 = vsel %vm1759, %v1843, %v1540
        %v1876 = vsel %vm1759, %v1844, %v1542
        %v1877 = vsel %vm1759, %v1845, %v1544
        %v1878 = vsel %vm1759, %v1846, %v1546
        %v1879 = vsel %vm1759, %v1847, %v1548
        %v1880 = vsel %vm1759, %v1848, %v1550
        %v1881 = vsel %vm1759, %v1849, %v1552
        %v1882 = vsel %vm1759, %v1850, %v1554
        %v1883 = vsel %vm1759, %v1851, %v1556
        %v1884 = vsel %vm1759, %v1852, %v1558
        %v1885 = vsel %vm1759, %v1853, %v1560
        %v1886 = vsel %vm1759, %v1854, %v1562
        %v1887 = vsel %vm1759, %v1855, %v1564
        %v1888 = vsel %vm1759, %v1856, %v1566
        %v1889 = vsel %vm1792, %v1857, %v1632
        %v1890 = vsel %vm1792, %v1858, %v1634
        %v1891 = vsel %vm1792, %v1859, %v1636
        %v1892 = vsel %vm1792, %v1860, %v1638
        %v1893 = vsel %vm1792, %v1861, %v1640
        %v1894 = vsel %vm1792, %v1862, %v1642
        %v1895 = vsel %vm1792, %v1863, %v1644
        %v1896 = vsel %vm1792, %v1864, %v1646
        %v1897 = vsel %vm1792, %v1865, %v1648
        %v1898 = vsel %vm1792, %v1866, %v1650
        %v1899 = vsel %vm1792, %v1867, %v1652
        %v1900 = vsel %vm1792, %v1868, %v1654
        %v1901 = vsel %vm1792, %v1869, %v1656
        %v1902 = vsel %vm1792, %v1870, %v1658
        %v1903 = vsel %vm1792, %v1871, %v1660
        %v1904 = vsel %vm1792, %v1872, %v1662
        %v1905 = vsel %vm1792, %v1873, %v1664
        %v1906 = vsel %vm1792, %v1874, %v1666
        %v1907 = vsel %vm1792, %v1875, %v1668
        %v1908 = vsel %vm1792, %v1876, %v1670
        %v1909 = vsel %vm1792, %v1877, %v1672
        %v1910 = vsel %vm1792, %v1878, %v1674
        %v1911 = vsel %vm1792, %v1879, %v1676
        %v1912 = vsel %vm1792, %v1880, %v1678
        %v1913 = vsel %vm1792, %v1881, %v1680
        %v1914 = vsel %vm1792, %v1882, %v1682
        %v1915 = vsel %vm1792, %v1883, %v1684
        %v1916 = vsel %vm1792, %v1884, %v1686
        %v1917 = vsel %vm1792, %v1885, %v1688
        %v1918 = vsel %vm1792, %v1886, %v1690
        %v1919 = vsel %vm1792, %v1887, %v1692
        %v1920 = vsel %vm1792, %v1888, %v1694
        %v1921 = vpack.c.bf16 %v1794, %v1793
        %v1922 = vpack.c.bf16 %v1890, %v1889
        %v1923 = vpack.c.bf16 %v928, %v927
        %v1924 = vpack.c.bf16 %v1796, %v1795
        %v1925 = vpack.c.bf16 %v1892, %v1891
        %v1926 = vpack.c.bf16 %v930, %v929
        %v1927 = vpack.c.bf16 %v1798, %v1797
        %v1928 = vpack.c.bf16 %v1894, %v1893
        %v1929 = vpack.c.bf16 %v932, %v931
        %v1930 = vpack.c.bf16 %v1800, %v1799
        %v1931 = vpack.c.bf16 %v1896, %v1895
        %v1932 = vpack.c.bf16 %v934, %v933
        %v1933 = vpack.c.bf16 %v1802, %v1801
        %v1934 = vpack.c.bf16 %v1898, %v1897
        %v1935 = vpack.c.bf16 %v936, %v935
        %v1936 = vpack.c.bf16 %v1804, %v1803
        %v1937 = vpack.c.bf16 %v1900, %v1899
        %v1938 = vpack.c.bf16 %v938, %v937
        %v1939 = vpack.c.bf16 %v1806, %v1805
        %v1940 = vpack.c.bf16 %v1902, %v1901
        %v1941 = vpack.c.bf16 %v940, %v939
        %v1942 = vpack.c.bf16 %v1808, %v1807
        %v1943 = vpack.c.bf16 %v1904, %v1903
        %v1944 = vpack.c.bf16 %v942, %v941
        %v1945 = vpack.c.bf16 %v1810, %v1809
        %v1946 = vpack.c.bf16 %v1906, %v1905
        %v1947 = vpack.c.bf16 %v944, %v943
        %v1948 = vpack.c.bf16 %v1812, %v1811
        %v1949 = vpack.c.bf16 %v1908, %v1907
        %v1950 = vpack.c.bf16 %v946, %v945
        %v1951 = vpack.c.bf16 %v1814, %v1813
        %v1952 = vpack.c.bf16 %v1910, %v1909
        %v1953 = vpack.c.bf16 %v948, %v947
        %v1954 = vpack.c.bf16 %v1816, %v1815
        %v1955 = vpack.c.bf16 %v1912, %v1911
        %v1956 = vpack.c.bf16 %v950, %v949
        %v1957 = vpack.c.bf16 %v1818, %v1817
        %v1958 = vpack.c.bf16 %v1914, %v1913
        %v1959 = vpack.c.bf16 %v952, %v951
        %v1960 = vpack.c.bf16 %v1820, %v1819
        %v1961 = vpack.c.bf16 %v1916, %v1915
        %v1962 = vpack.c.bf16 %v954, %v953
        %v1963 = vpack.c.bf16 %v1822, %v1821
        %v1964 = vpack.c.bf16 %v1918, %v1917
        %v1965 = vpack.c.bf16 %v956, %v955
        %v1966 = vpack.c.bf16 %v1824, %v1823
        %v1967 = vpack.c.bf16 %v1920, %v1919
        %v1968 = vpack.c.bf16 %v958, %v957
        %v1969 = vld [vmem:[%s2] sm:$0xf]
        %v1970 = vld [vmem:[%s2 + $0x4] sm:$0xf]
        %v1971 = vld [vmem:[%s2 + $0x8] sm:$0xf]
        %v1972 = vld [vmem:[%s2 + $0xc] sm:$0xf]
        %v1973 = vld [vmem:[%s2 + $0x10] sm:$0xf]
        %v1974 = vld [vmem:[%s2 + $0x14] sm:$0xf]
        %v1975 = vld [vmem:[%s2 + $0x18] sm:$0xf]
        %v1976 = vld [vmem:[%s2 + $0x1c] sm:$0xf]
        %v1977 = vld [vmem:[%s2 + $0x20] sm:$0xf]
        %v1978 = vld [vmem:[%s2 + $0x24] sm:$0xf]
        %v1979 = vld [vmem:[%s2 + $0x28] sm:$0xf]
        %v1980 = vld [vmem:[%s2 + $0x2c] sm:$0xf]
        %v1981 = vld [vmem:[%s2 + $0x30] sm:$0xf]
        %v1982 = vld [vmem:[%s2 + $0x34] sm:$0xf]
        %v1983 = vld [vmem:[%s2 + $0x38] sm:$0xf]
        %v1984 = vld [vmem:[%s2 + $0x3c] sm:$0xf]
        %v1985 = vld [vmem:[%s2 + $0x40] sm:$0xf]
        %v1986 = vld [vmem:[%s2 + $0x44] sm:$0xf]
        %v1987 = vld [vmem:[%s2 + $0x48] sm:$0xf]
        %v1988 = vld [vmem:[%s2 + $0x4c] sm:$0xf]
        %v1989 = vld [vmem:[%s2 + $0x50] sm:$0xf]
        %v1990 = vld [vmem:[%s2 + $0x54] sm:$0xf]
        %v1991 = vld [vmem:[%s2 + $0x58] sm:$0xf]
        %v1992 = vld [vmem:[%s2 + $0x5c] sm:$0xf]
        %v1993 = vld [vmem:[%s2 + $0x60] sm:$0xf]
        %v1994 = vld [vmem:[%s2 + $0x64] sm:$0xf]
        %v1995 = vld [vmem:[%s2 + $0x68] sm:$0xf]
        %v1996 = vld [vmem:[%s2 + $0x6c] sm:$0xf]
        %v1997 = vld [vmem:[%s2 + $0x70] sm:$0xf]
        %v1998 = vld [vmem:[%s2 + $0x74] sm:$0xf]
        %v1999 = vld [vmem:[%s2 + $0x78] sm:$0xf]
        %v2000 = vld [vmem:[%s2 + $0x7c] sm:$0xf]
        %v2001 = vld [vmem:[%s2 + $0x80] sm:$0xf]
        %v2002 = vld [vmem:[%s2 + $0x84] sm:$0xf]
        %v2003 = vld [vmem:[%s2 + $0x88] sm:$0xf]
        %v2004 = vld [vmem:[%s2 + $0x8c] sm:$0xf]
        %v2041 = vunpack.c.l.b16 %v1969
        %v2042 = vunpack.c.l.b16 %v1970
        %v2043 = vunpack.c.l.b16 %v1971
        %v2044 = vunpack.c.l.b16 %v1972
        %v2045 = vunpack.c.l.b16 %v1973
        %v2046 = vunpack.c.l.b16 %v1974
        %v2047 = vunpack.c.l.b16 %v1975
        %v2048 = vunpack.c.l.b16 %v1976
        %v2049 = vunpack.c.l.b16 %v1977
        %v2050 = vunpack.c.l.b16 %v1978
        %v2051 = vunpack.c.l.b16 %v1979
        %v2052 = vunpack.c.l.b16 %v1980
        %v2053 = vunpack.c.l.b16 %v1981
        %v2054 = vunpack.c.l.b16 %v1982
        %v2055 = vunpack.c.l.b16 %v1983
        %v2056 = vunpack.c.l.b16 %v1984
        %v2057 = vunpack.c.l.b16 %v1985
        %v2058 = vunpack.c.l.b16 %v1986
        %v2059 = vunpack.c.l.b16 %v1987
        %v2060 = vunpack.c.l.b16 %v1988
        %v2061 = vunpack.c.l.b16 %v1989
        %v2062 = vunpack.c.l.b16 %v1990
        %v2063 = vunpack.c.l.b16 %v1991
        %v2064 = vunpack.c.l.b16 %v1992
        %v2065 = vunpack.c.l.b16 %v1993
        %v2066 = vunpack.c.l.b16 %v1994
        %v2067 = vunpack.c.l.b16 %v1995
        %v2068 = vunpack.c.l.b16 %v1996
        %v2069 = vunpack.c.l.b16 %v1997
        %v2070 = vunpack.c.l.b16 %v1998
        %v2071 = vunpack.c.l.b16 %v1999
        %v2072 = vunpack.c.l.b16 %v2000
        %v2073 = vunpack.c.l.b16 %v2001
        %v2074 = vunpack.c.l.b16 %v2002
        %v2075 = vunpack.c.l.b16 %v2003
        %v2076 = vunpack.c.l.b16 %v2004
        %v2077 = vpack.c.b16 %v2042, %v2041
        %v2078 = vpack.c.b16 %v2044, %v2043
        %v2079 = vpack.c.b16 %v2046, %v2045
        %v2080 = vpack.c.b16 %v2048, %v2047
        %v2081 = vpack.c.b16 %v2050, %v2049
        %v2082 = vpack.c.b16 %v2052, %v2051
        %v2083 = vpack.c.b16 %v2054, %v2053
        %v2084 = vpack.c.b16 %v2056, %v2055
        %v2085 = vpack.c.b16 %v2058, %v2057
        %v2086 = vpack.c.b16 %v2060, %v2059
        %v2087 = vpack.c.b16 %v2062, %v2061
        %v2088 = vpack.c.b16 %v2064, %v2063
        %v2089 = vpack.c.b16 %v2066, %v2065
        %v2090 = vpack.c.b16 %v2068, %v2067
        %v2091 = vpack.c.b16 %v2070, %v2069
        %v2092 = vpack.c.b16 %v2072, %v2071
        %v2093 = vpack.c.b16 %v2074, %v2073
        %v2094 = vpack.c.b16 %v2076, %v2075
        %v2114 = vsel %vm582, %v1923, 0
        %v2117 = vsel %vm582, %v1926, 0
        %v2120 = vsel %vm582, %v1929, 0
        %v2123 = vsel %vm582, %v1932, 0
        %v2126 = vsel %vm582, %v1935, 0
        %v2129 = vsel %vm582, %v1938, 0
        %v2132 = vsel %vm582, %v1941, 0
        %v2135 = vsel %vm582, %v1944, 0
        %v2138 = vsel %vm582, %v1947, 0
        %v2141 = vsel %vm582, %v1950, 0
        %v2144 = vsel %vm582, %v1953, 0
        %v2147 = vsel %vm582, %v1956, 0
        %v2150 = vsel %vm582, %v1959, 0
        %v2153 = vsel %vm582, %v1962, 0
        %v2156 = vsel %vm582, %v1965, 0
        %v2159 = vsel %vm582, %v1968, 0
        %2161 = vmatprep.subr.bf16.mxu0 0
        %2162 = vmatpush1.bf16.msra.mxu0 %v2084
        %2163 = vmatprep.subr.bf16.mxu0 0
        %2164 = vmatpush1.bf16.msra.mxu0 %v2083
        %2165 = vmatprep.subr.bf16.mxu0 0
        %2166 = vmatpush1.bf16.msra.mxu0 %v2082
        %2167 = vmatprep.subr.bf16.mxu0 0
        %2168 = vmatpush1.bf16.msra.mxu0 %v2081
        %2169 = vmatprep.subr.bf16.mxu0 0
        %2170 = vmatpush1.bf16.msra.mxu0 %v2080
        %2171 = vmatprep.subr.bf16.mxu0 0
        %2172 = vmatpush1.bf16.msra.mxu0 %v2079
        %2173 = vmatprep.subr.bf16.mxu0 0
        %2174 = vmatpush1.bf16.msra.mxu0 %v2078
        %2175 = vmatprep.subr.bf16.mxu0 0
        %2176 = vmatpush1.bf16.msra.mxu0 %v2077
        %2177 = vmatprep.subr.bf16.mxu0 0
        %2178 = vmatpush2.bf16.msra.mxu0 %v2092
        %2179 = vmatprep.subr.bf16.mxu0 0
        %2180 = vmatpush2.bf16.msra.mxu0 %v2091
        %2181 = vmatprep.subr.bf16.mxu0 0
        %2182 = vmatpush2.bf16.msra.mxu0 %v2090
        %2183 = vmatprep.subr.bf16.mxu0 0
        %2184 = vmatpush2.bf16.msra.mxu0 %v2089
        %2185 = vmatprep.subr.bf16.mxu0 0
        %2186 = vmatpush2.bf16.msra.mxu0 %v2088
        %2187 = vmatprep.subr.bf16.mxu0 0
        %2188 = vmatpush2.bf16.msra.mxu0 %v2087
        %2189 = vmatprep.subr.bf16.mxu0 0
        %2190 = vmatpush2.bf16.msra.mxu0 %v2086
        %2191 = vmatprep.subr.bf16.mxu0 0
        %2192 = vmatpush2.bf16.msra.mxu0 %v2085
        %2193 = vmatprep.mubr.bf16.mxu0 %v1922
        %2194 = vmatmul.mubr.bf16.gmra.mxu0 %v1921
        %v2195 = vpop.f32.mrf.mxu0
        %v2196 = vadd.f32 0.0, %v2195
        %v2197 = vpop.f32.mrf.mxu0
        %v2198 = vpop.f32.mrf.mxu0
        %v2199 = vadd.f32 0.0, %v2198
        %v2200 = vpop.f32.mrf.mxu0
        %2201 = vmatprep.mubr.bf16.mxu0 %v1925
        %2202 = vmatmul.mubr.bf16.gmra.mxu0 %v1924
        %v2203 = vpop.f32.mrf.mxu0
        %v2204 = vadd.f32 0.0, %v2203
        %v2205 = vpop.f32.mrf.mxu0
        %v2206 = vpop.f32.mrf.mxu0
        %v2207 = vadd.f32 0.0, %v2206
        %v2208 = vpop.f32.mrf.mxu0
        %2209 = vmatprep.mubr.bf16.mxu0 %v1928
        %2210 = vmatmul.mubr.bf16.gmra.mxu0 %v1927
        %v2211 = vpop.f32.mrf.mxu0
        %v2212 = vadd.f32 0.0, %v2211
        %v2213 = vpop.f32.mrf.mxu0
        %v2214 = vpop.f32.mrf.mxu0
        %v2215 = vadd.f32 0.0, %v2214
        %v2216 = vpop.f32.mrf.mxu0
        %2217 = vmatprep.mubr.bf16.mxu0 %v1931
        %2218 = vmatmul.mubr.bf16.gmra.mxu0 %v1930
        %v2219 = vpop.f32.mrf.mxu0
        %v2220 = vadd.f32 0.0, %v2219
        %v2221 = vpop.f32.mrf.mxu0
        %v2222 = vpop.f32.mrf.mxu0
        %v2223 = vadd.f32 0.0, %v2222
        %v2224 = vpop.f32.mrf.mxu0
        %2225 = vmatprep.mubr.bf16.mxu0 %v1934
        %2226 = vmatmul.mubr.bf16.gmra.mxu0 %v1933
        %v2227 = vpop.f32.mrf.mxu0
        %v2228 = vadd.f32 0.0, %v2227
        %v2229 = vpop.f32.mrf.mxu0
        %v2230 = vpop.f32.mrf.mxu0
        %v2231 = vadd.f32 0.0, %v2230
        %v2232 = vpop.f32.mrf.mxu0
        %2233 = vmatprep.mubr.bf16.mxu0 %v1937
        %2234 = vmatmul.mubr.bf16.gmra.mxu0 %v1936
        %v2235 = vpop.f32.mrf.mxu0
        %v2236 = vadd.f32 0.0, %v2235
        %v2237 = vpop.f32.mrf.mxu0
        %v2238 = vpop.f32.mrf.mxu0
        %v2239 = vadd.f32 0.0, %v2238
        %v2240 = vpop.f32.mrf.mxu0
        %2241 = vmatprep.mubr.bf16.mxu0 %v1940
        %2242 = vmatmul.mubr.bf16.gmra.mxu0 %v1939
        %v2243 = vpop.f32.mrf.mxu0
        %v2244 = vadd.f32 0.0, %v2243
        %v2245 = vpop.f32.mrf.mxu0
        %v2246 = vpop.f32.mrf.mxu0
        %v2247 = vadd.f32 0.0, %v2246
        %v2248 = vpop.f32.mrf.mxu0
        %2249 = vmatprep.mubr.bf16.mxu0 %v1943
        %2250 = vmatmul.mubr.bf16.gmra.mxu0 %v1942
        %v2251 = vpop.f32.mrf.mxu0
        %v2252 = vadd.f32 0.0, %v2251
        %v2253 = vpop.f32.mrf.mxu0
        %v2254 = vpop.f32.mrf.mxu0
        %v2255 = vadd.f32 0.0, %v2254
        %v2256 = vpop.f32.mrf.mxu0
        %2257 = vmatprep.mubr.bf16.mxu0 %v1946
        %2258 = vmatmul.mubr.bf16.gmra.mxu0 %v1945
        %v2259 = vpop.f32.mrf.mxu0
        %v2260 = vadd.f32 0.0, %v2259
        %v2261 = vpop.f32.mrf.mxu0
        %v2262 = vpop.f32.mrf.mxu0
        %v2263 = vadd.f32 0.0, %v2262
        %v2264 = vpop.f32.mrf.mxu0
        %2265 = vmatprep.mubr.bf16.mxu0 %v1949
        %2266 = vmatmul.mubr.bf16.gmra.mxu0 %v1948
        %v2267 = vpop.f32.mrf.mxu0
        %v2268 = vadd.f32 0.0, %v2267
        %v2269 = vpop.f32.mrf.mxu0
        %v2270 = vpop.f32.mrf.mxu0
        %v2271 = vadd.f32 0.0, %v2270
        %v2272 = vpop.f32.mrf.mxu0
        %2273 = vmatprep.mubr.bf16.mxu0 %v1952
        %2274 = vmatmul.mubr.bf16.gmra.mxu0 %v1951
        %v2275 = vpop.f32.mrf.mxu0
        %v2276 = vadd.f32 0.0, %v2275
        %v2277 = vpop.f32.mrf.mxu0
        %v2278 = vpop.f32.mrf.mxu0
        %v2279 = vadd.f32 0.0, %v2278
        %v2280 = vpop.f32.mrf.mxu0
        %2281 = vmatprep.mubr.bf16.mxu0 %v1955
        %2282 = vmatmul.mubr.bf16.gmra.mxu0 %v1954
        %v2283 = vpop.f32.mrf.mxu0
        %v2284 = vadd.f32 0.0, %v2283
        %v2285 = vpop.f32.mrf.mxu0
        %v2286 = vpop.f32.mrf.mxu0
        %v2287 = vadd.f32 0.0, %v2286
        %v2288 = vpop.f32.mrf.mxu0
        %2289 = vmatprep.mubr.bf16.mxu0 %v1958
        %2290 = vmatmul.mubr.bf16.gmra.mxu0 %v1957
        %v2291 = vpop.f32.mrf.mxu0
        %v2292 = vadd.f32 0.0, %v2291
        %v2293 = vpop.f32.mrf.mxu0
        %v2294 = vpop.f32.mrf.mxu0
        %v2295 = vadd.f32 0.0, %v2294
        %v2296 = vpop.f32.mrf.mxu0
        %2297 = vmatprep.mubr.bf16.mxu0 %v1961
        %2298 = vmatmul.mubr.bf16.gmra.mxu0 %v1960
        %v2299 = vpop.f32.mrf.mxu0
        %v2300 = vadd.f32 0.0, %v2299
        %v2301 = vpop.f32.mrf.mxu0
        %v2302 = vpop.f32.mrf.mxu0
        %v2303 = vadd.f32 0.0, %v2302
        %v2304 = vpop.f32.mrf.mxu0
        %2305 = vmatprep.mubr.bf16.mxu0 %v1964
        %2306 = vmatmul.mubr.bf16.gmra.mxu0 %v1963
        %v2307 = vpop.f32.mrf.mxu0
        %v2308 = vadd.f32 0.0, %v2307
        %v2309 = vpop.f32.mrf.mxu0
        %v2310 = vpop.f32.mrf.mxu0
        %v2311 = vadd.f32 0.0, %v2310
        %v2312 = vpop.f32.mrf.mxu0
        %2313 = vmatprep.mubr.bf16.mxu0 %v1967
        %2314 = vmatmul.mubr.bf16.gmra.mxu0 %v1966
        %v2315 = vpop.f32.mrf.mxu0
        %v2316 = vadd.f32 0.0, %v2315
        %v2317 = vpop.f32.mrf.mxu0
        %v2318 = vpop.f32.mrf.mxu0
        %v2319 = vadd.f32 0.0, %v2318
        %v2320 = vpop.f32.mrf.mxu0
        %2321 = vdwg.mxu0
        %2322 = vmatprep.subr.bf16.mxu0 0
        %2323 = vmatpush1.bf16.msra.mxu0 0
        %2324 = vmatprep.subr.bf16.mxu0 0
        %2325 = vmatpush1.bf16.msra.mxu0 0
        %2326 = vmatprep.subr.bf16.mxu0 0
        %2327 = vmatpush1.bf16.msra.mxu0 0
        %2328 = vmatprep.subr.bf16.mxu0 0
        %2329 = vmatpush1.bf16.msra.mxu0 0
        %2330 = vmatprep.subr.bf16.mxu0 0
        %2331 = vmatpush1.bf16.msra.mxu0 0
        %2332 = vmatprep.subr.bf16.mxu0 0
        %2333 = vmatpush1.bf16.msra.mxu0 0
        %2334 = vmatprep.subr.bf16.mxu0 0
        %2335 = vmatpush1.bf16.msra.mxu0 %v2094
        %2336 = vmatprep.subr.bf16.mxu0 0
        %2337 = vmatpush1.bf16.msra.mxu0 %v2093
        %2338 = vmatprep.subr.bf16.mxu0 0
        %2339 = vmatpush2.bf16.msra.mxu0 0
        %2340 = vmatprep.subr.bf16.mxu0 0
        %2341 = vmatpush2.bf16.msra.mxu0 0
        %2342 = vmatprep.subr.bf16.mxu0 0
        %2343 = vmatpush2.bf16.msra.mxu0 0
        %2344 = vmatprep.subr.bf16.mxu0 0
        %2345 = vmatpush2.bf16.msra.mxu0 0
        %2346 = vmatprep.subr.bf16.mxu0 0
        %2347 = vmatpush2.bf16.msra.mxu0 0
        %2348 = vmatprep.subr.bf16.mxu0 0
        %2349 = vmatpush2.bf16.msra.mxu0 0
        %2350 = vmatprep.subr.bf16.mxu0 0
        %2351 = vmatpush2.bf16.msra.mxu0 0
        %2352 = vmatprep.subr.bf16.mxu0 0
        %2353 = vmatpush2.bf16.msra.mxu0 0
        %2354 = vmatprep.mubr.bf16.mxu0 0
        %2355 = vmatmul.mubr.bf16.gmra.mxu0 %v2114
        %v2356 = vpop.f32.mrf.mxu0
        %v2357 = vadd.f32 %v2196, %v2356
        %v2358 = vpop.f32.mrf.mxu0
        %v2359 = vpop.f32.mrf.mxu0
        %v2360 = vadd.f32 %v2199, %v2359
        %v2361 = vpop.f32.mrf.mxu0
        %2362 = vmatprep.mubr.bf16.mxu0 0
        %2363 = vmatmul.mubr.bf16.gmra.mxu0 %v2117
        %v2364 = vpop.f32.mrf.mxu0
        %v2365 = vadd.f32 %v2204, %v2364
        %v2366 = vpop.f32.mrf.mxu0
        %v2367 = vpop.f32.mrf.mxu0
        %v2368 = vadd.f32 %v2207, %v2367
        %v2369 = vpop.f32.mrf.mxu0
        %2370 = vmatprep.mubr.bf16.mxu0 0
        %2371 = vmatmul.mubr.bf16.gmra.mxu0 %v2120
        %v2372 = vpop.f32.mrf.mxu0
        %v2373 = vadd.f32 %v2212, %v2372
        %v2374 = vpop.f32.mrf.mxu0
        %v2375 = vpop.f32.mrf.mxu0
        %v2376 = vadd.f32 %v2215, %v2375
        %v2377 = vpop.f32.mrf.mxu0
        %2378 = vmatprep.mubr.bf16.mxu0 0
        %2379 = vmatmul.mubr.bf16.gmra.mxu0 %v2123
        %v2380 = vpop.f32.mrf.mxu0
        %v2381 = vadd.f32 %v2220, %v2380
        %v2382 = vpop.f32.mrf.mxu0
        %v2383 = vpop.f32.mrf.mxu0
        %v2384 = vadd.f32 %v2223, %v2383
        %v2385 = vpop.f32.mrf.mxu0
        %2386 = vmatprep.mubr.bf16.mxu0 0
        %2387 = vmatmul.mubr.bf16.gmra.mxu0 %v2126
        %v2388 = vpop.f32.mrf.mxu0
        %v2389 = vadd.f32 %v2228, %v2388
        %v2390 = vpop.f32.mrf.mxu0
        %v2391 = vpop.f32.mrf.mxu0
        %v2392 = vadd.f32 %v2231, %v2391
        %v2393 = vpop.f32.mrf.mxu0
        %2394 = vmatprep.mubr.bf16.mxu0 0
        %2395 = vmatmul.mubr.bf16.gmra.mxu0 %v2129
        %v2396 = vpop.f32.mrf.mxu0
        %v2397 = vadd.f32 %v2236, %v2396
        %v2398 = vpop.f32.mrf.mxu0
        %v2399 = vpop.f32.mrf.mxu0
        %v2400 = vadd.f32 %v2239, %v2399
        %v2401 = vpop.f32.mrf.mxu0
        %2402 = vmatprep.mubr.bf16.mxu0 0
        %2403 = vmatmul.mubr.bf16.gmra.mxu0 %v2132
        %v2404 = vpop.f32.mrf.mxu0
        %v2405 = vadd.f32 %v2244, %v2404
        %v2406 = vpop.f32.mrf.mxu0
        %v2407 = vpop.f32.mrf.mxu0
        %v2408 = vadd.f32 %v2247, %v2407
        %v2409 = vpop.f32.mrf.mxu0
        %2410 = vmatprep.mubr.bf16.mxu0 0
        %2411 = vmatmul.mubr.bf16.gmra.mxu0 %v2135
        %v2412 = vpop.f32.mrf.mxu0
        %v2413 = vadd.f32 %v2252, %v2412
        %v2414 = vpop.f32.mrf.mxu0
        %v2415 = vpop.f32.mrf.mxu0
        %v2416 = vadd.f32 %v2255, %v2415
        %v2417 = vpop.f32.mrf.mxu0
        %2418 = vmatprep.mubr.bf16.mxu0 0
        %2419 = vmatmul.mubr.bf16.gmra.mxu0 %v2138
        %v2420 = vpop.f32.mrf.mxu0
        %v2421 = vadd.f32 %v2260, %v2420
        %v2422 = vpop.f32.mrf.mxu0
        %v2423 = vpop.f32.mrf.mxu0
        %v2424 = vadd.f32 %v2263, %v2423
        %v2425 = vpop.f32.mrf.mxu0
        %2426 = vmatprep.mubr.bf16.mxu0 0
        %2427 = vmatmul.mubr.bf16.gmra.mxu0 %v2141
        %v2428 = vpop.f32.mrf.mxu0
        %v2429 = vadd.f32 %v2268, %v2428
        %v2430 = vpop.f32.mrf.mxu0
        %v2431 = vpop.f32.mrf.mxu0
        %v2432 = vadd.f32 %v2271, %v2431
        %v2433 = vpop.f32.mrf.mxu0
        %2434 = vmatprep.mubr.bf16.mxu0 0
        %2435 = vmatmul.mubr.bf16.gmra.mxu0 %v2144
        %v2436 = vpop.f32.mrf.mxu0
        %v2437 = vadd.f32 %v2276, %v2436
        %v2438 = vpop.f32.mrf.mxu0
        %v2439 = vpop.f32.mrf.mxu0
        %v2440 = vadd.f32 %v2279, %v2439
        %v2441 = vpop.f32.mrf.mxu0
        %2442 = vmatprep.mubr.bf16.mxu0 0
        %2443 = vmatmul.mubr.bf16.gmra.mxu0 %v2147
        %v2444 = vpop.f32.mrf.mxu0
        %v2445 = vadd.f32 %v2284, %v2444
        %v2446 = vpop.f32.mrf.mxu0
        %v2447 = vpop.f32.mrf.mxu0
        %v2448 = vadd.f32 %v2287, %v2447
        %v2449 = vpop.f32.mrf.mxu0
        %2450 = vmatprep.mubr.bf16.mxu0 0
        %2451 = vmatmul.mubr.bf16.gmra.mxu0 %v2150
        %v2452 = vpop.f32.mrf.mxu0
        %v2453 = vadd.f32 %v2292, %v2452
        %v2454 = vpop.f32.mrf.mxu0
        %v2455 = vpop.f32.mrf.mxu0
        %v2456 = vadd.f32 %v2295, %v2455
        %v2457 = vpop.f32.mrf.mxu0
        %2458 = vmatprep.mubr.bf16.mxu0 0
        %2459 = vmatmul.mubr.bf16.gmra.mxu0 %v2153
        %v2460 = vpop.f32.mrf.mxu0
        %v2461 = vadd.f32 %v2300, %v2460
        %v2462 = vpop.f32.mrf.mxu0
        %v2463 = vpop.f32.mrf.mxu0
        %v2464 = vadd.f32 %v2303, %v2463
        %v2465 = vpop.f32.mrf.mxu0
        %2466 = vmatprep.mubr.bf16.mxu0 0
        %2467 = vmatmul.mubr.bf16.gmra.mxu0 %v2156
        %v2468 = vpop.f32.mrf.mxu0
        %v2469 = vadd.f32 %v2308, %v2468
        %v2470 = vpop.f32.mrf.mxu0
        %v2471 = vpop.f32.mrf.mxu0
        %v2472 = vadd.f32 %v2311, %v2471
        %v2473 = vpop.f32.mrf.mxu0
        %2474 = vmatprep.mubr.bf16.mxu0 0
        %2475 = vmatmul.mubr.bf16.gmra.mxu0 %v2159
        %v2476 = vpop.f32.mrf.mxu0
        %v2477 = vadd.f32 %v2316, %v2476
        %v2478 = vpop.f32.mrf.mxu0
        %v2479 = vpop.f32.mrf.mxu0
        %v2480 = vadd.f32 %v2319, %v2479
        %v2481 = vpop.f32.mrf.mxu0
        %2482 = vdwg.mxu0
        %v2483 = vmax.f32 %v2357, 0.0
        %v2484 = vmax.f32 %v2360, 0.0
        %v2485 = vmax.f32 %v2365, 0.0
        %v2486 = vmax.f32 %v2368, 0.0
        %v2487 = vmax.f32 %v2373, 0.0
        %v2488 = vmax.f32 %v2376, 0.0
        %v2489 = vmax.f32 %v2381, 0.0
        %v2490 = vmax.f32 %v2384, 0.0
        %v2491 = vmax.f32 %v2389, 0.0
        %v2492 = vmax.f32 %v2392, 0.0
        %v2493 = vmax.f32 %v2397, 0.0
        %v2494 = vmax.f32 %v2400, 0.0
        %v2495 = vmax.f32 %v2405, 0.0
        %v2496 = vmax.f32 %v2408, 0.0
        %v2497 = vmax.f32 %v2413, 0.0
        %v2498 = vmax.f32 %v2416, 0.0
        %v2499 = vmax.f32 %v2421, 0.0
        %v2500 = vmax.f32 %v2424, 0.0
        %v2501 = vmax.f32 %v2429, 0.0
        %v2502 = vmax.f32 %v2432, 0.0
        %v2503 = vmax.f32 %v2437, 0.0
        %v2504 = vmax.f32 %v2440, 0.0
        %v2505 = vmax.f32 %v2445, 0.0
        %v2506 = vmax.f32 %v2448, 0.0
        %v2507 = vmax.f32 %v2453, 0.0
        %v2508 = vmax.f32 %v2456, 0.0
        %v2509 = vmax.f32 %v2461, 0.0
        %v2510 = vmax.f32 %v2464, 0.0
        %v2511 = vmax.f32 %v2469, 0.0
        %v2512 = vmax.f32 %v2472, 0.0
        %v2513 = vmax.f32 %v2477, 0.0
        %v2514 = vmax.f32 %v2480, 0.0
        %v2515 = vpack.c.bf16 %v2484, %v2483
        %v2516 = vpack.c.bf16 %v2486, %v2485
        %v2517 = vpack.c.bf16 %v2488, %v2487
        %v2518 = vpack.c.bf16 %v2490, %v2489
        %v2519 = vpack.c.bf16 %v2492, %v2491
        %v2520 = vpack.c.bf16 %v2494, %v2493
        %v2521 = vpack.c.bf16 %v2496, %v2495
        %v2522 = vpack.c.bf16 %v2498, %v2497
        %v2523 = vpack.c.bf16 %v2500, %v2499
        %v2524 = vpack.c.bf16 %v2502, %v2501
        %v2525 = vpack.c.bf16 %v2504, %v2503
        %v2526 = vpack.c.bf16 %v2506, %v2505
        %v2527 = vpack.c.bf16 %v2508, %v2507
        %v2528 = vpack.c.bf16 %v2510, %v2509
        %v2529 = vpack.c.bf16 %v2512, %v2511
        %v2530 = vpack.c.bf16 %v2514, %v2513
        %v2531 = vld [vmem:[%s3] sm:$0xf]
        %v2532 = vld [vmem:[%s3 + $0x4] sm:$0xf]
        %v2533 = vld [vmem:[%s3 + $0x8] sm:$0xf]
        %v2534 = vld [vmem:[%s3 + $0xc] sm:$0xf]
        %v2535 = vld [vmem:[%s195] sm:$0xf]
        %v2536 = vld [vmem:[%s195 + $0x4] sm:$0xf]
        %v2537 = vld [vmem:[%s195 + $0x8] sm:$0xf]
        %v2538 = vld [vmem:[%s195 + $0xc] sm:$0xf]
        %v2539 = vld [vmem:[%s195 + $0x10] sm:$0xf]
        %v2540 = vld [vmem:[%s195 + $0x14] sm:$0xf]
        %v2541 = vld [vmem:[%s195 + $0x18] sm:$0xf]
        %v2542 = vld [vmem:[%s195 + $0x1c] sm:$0xf]
        %v2543 = vld [vmem:[%s195 + $0x20] sm:$0xf]
        %v2544 = vld [vmem:[%s195 + $0x24] sm:$0xf]
        %v2545 = vld [vmem:[%s195 + $0x28] sm:$0xf]
        %v2546 = vld [vmem:[%s195 + $0x2c] sm:$0xf]
        %v2547 = vld [vmem:[%s195 + $0x30] sm:$0xf]
        %v2548 = vld [vmem:[%s195 + $0x34] sm:$0xf]
        %v2549 = vld [vmem:[%s195 + $0x38] sm:$0xf]
        %v2550 = vld [vmem:[%s195 + $0x3c] sm:$0xf]
        %v2551 = vld [vmem:[%s195 + $0x40] sm:$0xf]
        %v2552 = vld [vmem:[%s195 + $0x44] sm:$0xf]
        %v2553 = vld [vmem:[%s195 + $0x48] sm:$0xf]
        %v2554 = vld [vmem:[%s195 + $0x4c] sm:$0xf]
        %v2555 = vld [vmem:[%s195 + $0x50] sm:$0xf]
        %v2556 = vld [vmem:[%s195 + $0x54] sm:$0xf]
        %v2557 = vld [vmem:[%s195 + $0x58] sm:$0xf]
        %v2558 = vld [vmem:[%s195 + $0x5c] sm:$0xf]
        %v2559 = vld [vmem:[%s195 + $0x60] sm:$0xf]
        %v2560 = vld [vmem:[%s195 + $0x64] sm:$0xf]
        %v2561 = vld [vmem:[%s195 + $0x68] sm:$0xf]
        %v2562 = vld [vmem:[%s195 + $0x6c] sm:$0xf]
        %v2563 = vld [vmem:[%s195 + $0x70] sm:$0xf]
        %v2564 = vld [vmem:[%s195 + $0x74] sm:$0xf]
        %v2565 = vld [vmem:[%s195 + $0x78] sm:$0xf]
        %v2566 = vld [vmem:[%s195 + $0x7c] sm:$0xf]
        %v2567 = vunpack.c.l.bf16 %v2535
        %v2568 = vunpack.c.l.bf16 %v2536
        %v2569 = vunpack.c.l.bf16 %v2537
        %v2570 = vunpack.c.l.bf16 %v2538
        %v2571 = vunpack.c.l.bf16 %v2539
        %v2572 = vunpack.c.l.bf16 %v2540
        %v2573 = vunpack.c.l.bf16 %v2541
        %v2574 = vunpack.c.l.bf16 %v2542
        %v2575 = vunpack.c.l.bf16 %v2543
        %v2576 = vunpack.c.l.bf16 %v2544
        %v2577 = vunpack.c.l.bf16 %v2545
        %v2578 = vunpack.c.l.bf16 %v2546
        %v2579 = vunpack.c.l.bf16 %v2547
        %v2580 = vunpack.c.l.bf16 %v2548
        %v2581 = vunpack.c.l.bf16 %v2549
        %v2582 = vunpack.c.l.bf16 %v2550
        %v2583 = vunpack.c.l.bf16 %v2551
        %v2584 = vunpack.c.l.bf16 %v2552
        %v2585 = vunpack.c.l.bf16 %v2553
        %v2586 = vunpack.c.l.bf16 %v2554
        %v2587 = vunpack.c.l.bf16 %v2555
        %v2588 = vunpack.c.l.bf16 %v2556
        %v2589 = vunpack.c.l.bf16 %v2557
        %v2590 = vunpack.c.l.bf16 %v2558
        %v2591 = vunpack.c.l.bf16 %v2559
        %v2592 = vunpack.c.l.bf16 %v2560
        %v2593 = vunpack.c.l.bf16 %v2561
        %v2594 = vunpack.c.l.bf16 %v2562
        %v2595 = vunpack.c.l.bf16 %v2563
        %v2596 = vunpack.c.l.bf16 %v2564
        %v2597 = vunpack.c.l.bf16 %v2565
        %v2598 = vunpack.c.l.bf16 %v2566
        %v2603 = vunpack.c.l.b16 %v2531
        %v2604 = vunpack.c.l.b16 %v2532
        %v2605 = vunpack.c.l.b16 %v2533
        %v2606 = vunpack.c.l.b16 %v2534
        %v2607 = vpack.c.b16 %v2604, %v2603
        %v2608 = vpack.c.b16 %v2606, %v2605
        %v2612 = vsel %vm582, %v2515, 0
        %v2615 = vsel %vm582, %v2516, 0
        %v2618 = vsel %vm582, %v2517, 0
        %v2621 = vsel %vm582, %v2518, 0
        %v2624 = vsel %vm582, %v2519, 0
        %v2627 = vsel %vm582, %v2520, 0
        %v2630 = vsel %vm582, %v2521, 0
        %v2633 = vsel %vm582, %v2522, 0
        %v2636 = vsel %vm582, %v2523, 0
        %v2639 = vsel %vm582, %v2524, 0
        %v2642 = vsel %vm582, %v2525, 0
        %v2645 = vsel %vm582, %v2526, 0
        %v2648 = vsel %vm582, %v2527, 0
        %v2651 = vsel %vm582, %v2528, 0
        %v2654 = vsel %vm582, %v2529, 0
        %v2657 = vsel %vm582, %v2530, 0
        %2659 = vmatprep.subr.bf16.mxu0 0
        %2660 = vmatpush1.bf16.msra.mxu0 0
        %2661 = vmatprep.subr.bf16.mxu0 0
        %2662 = vmatpush1.bf16.msra.mxu0 0
        %2663 = vmatprep.subr.bf16.mxu0 0
        %2664 = vmatpush1.bf16.msra.mxu0 0
        %2665 = vmatprep.subr.bf16.mxu0 0
        %2666 = vmatpush1.bf16.msra.mxu0 0
        %2667 = vmatprep.subr.bf16.mxu0 0
        %2668 = vmatpush1.bf16.msra.mxu0 0
        %2669 = vmatprep.subr.bf16.mxu0 0
        %2670 = vmatpush1.bf16.msra.mxu0 0
        %2671 = vmatprep.subr.bf16.mxu0 0
        %2672 = vmatpush1.bf16.msra.mxu0 %v2608
        %2673 = vmatprep.subr.bf16.mxu0 0
        %2674 = vmatpush1.bf16.msra.mxu0 %v2607
        %2675 = vmatprep.subr.bf16.mxu0 0
        %2676 = vmatpush2.bf16.msra.mxu0 0
        %2677 = vmatprep.subr.bf16.mxu0 0
        %2678 = vmatpush2.bf16.msra.mxu0 0
        %2679 = vmatprep.subr.bf16.mxu0 0
        %2680 = vmatpush2.bf16.msra.mxu0 0
        %2681 = vmatprep.subr.bf16.mxu0 0
        %2682 = vmatpush2.bf16.msra.mxu0 0
        %2683 = vmatprep.subr.bf16.mxu0 0
        %2684 = vmatpush2.bf16.msra.mxu0 0
        %2685 = vmatprep.subr.bf16.mxu0 0
        %2686 = vmatpush2.bf16.msra.mxu0 0
        %2687 = vmatprep.subr.bf16.mxu0 0
        %2688 = vmatpush2.bf16.msra.mxu0 0
        %2689 = vmatprep.subr.bf16.mxu0 0
        %2690 = vmatpush2.bf16.msra.mxu0 0
        %2691 = vmatprep.mubr.bf16.mxu0 0
        %2692 = vmatmul.mubr.bf16.gmra.mxu0 %v2612
        %v2693 = vpop.f32.mrf.mxu0
        %v2694 = vadd.f32 %v2567, %v2693
        %v2695 = vpop.f32.mrf.mxu0
        %v2696 = vpop.f32.mrf.mxu0
        %v2697 = vadd.f32 %v2568, %v2696
        %v2698 = vpop.f32.mrf.mxu0
        %2699 = vmatprep.mubr.bf16.mxu0 0
        %2700 = vmatmul.mubr.bf16.gmra.mxu0 %v2615
        %v2701 = vpop.f32.mrf.mxu0
        %v2702 = vadd.f32 %v2569, %v2701
        %v2703 = vpop.f32.mrf.mxu0
        %v2704 = vpop.f32.mrf.mxu0
        %v2705 = vadd.f32 %v2570, %v2704
        %v2706 = vpop.f32.mrf.mxu0
        %2707 = vmatprep.mubr.bf16.mxu0 0
        %2708 = vmatmul.mubr.bf16.gmra.mxu0 %v2618
        %v2709 = vpop.f32.mrf.mxu0
        %v2710 = vadd.f32 %v2571, %v2709
        %v2711 = vpop.f32.mrf.mxu0
        %v2712 = vpop.f32.mrf.mxu0
        %v2713 = vadd.f32 %v2572, %v2712
        %v2714 = vpop.f32.mrf.mxu0
        %2715 = vmatprep.mubr.bf16.mxu0 0
        %2716 = vmatmul.mubr.bf16.gmra.mxu0 %v2621
        %v2717 = vpop.f32.mrf.mxu0
        %v2718 = vadd.f32 %v2573, %v2717
        %v2719 = vpop.f32.mrf.mxu0
        %v2720 = vpop.f32.mrf.mxu0
        %v2721 = vadd.f32 %v2574, %v2720
        %v2722 = vpop.f32.mrf.mxu0
        %2723 = vmatprep.mubr.bf16.mxu0 0
        %2724 = vmatmul.mubr.bf16.gmra.mxu0 %v2624
        %v2725 = vpop.f32.mrf.mxu0
        %v2726 = vadd.f32 %v2575, %v2725
        %v2727 = vpop.f32.mrf.mxu0
        %v2728 = vpop.f32.mrf.mxu0
        %v2729 = vadd.f32 %v2576, %v2728
        %v2730 = vpop.f32.mrf.mxu0
        %2731 = vmatprep.mubr.bf16.mxu0 0
        %2732 = vmatmul.mubr.bf16.gmra.mxu0 %v2627
        %v2733 = vpop.f32.mrf.mxu0
        %v2734 = vadd.f32 %v2577, %v2733
        %v2735 = vpop.f32.mrf.mxu0
        %v2736 = vpop.f32.mrf.mxu0
        %v2737 = vadd.f32 %v2578, %v2736
        %v2738 = vpop.f32.mrf.mxu0
        %2739 = vmatprep.mubr.bf16.mxu0 0
        %2740 = vmatmul.mubr.bf16.gmra.mxu0 %v2630
        %v2741 = vpop.f32.mrf.mxu0
        %v2742 = vadd.f32 %v2579, %v2741
        %v2743 = vpop.f32.mrf.mxu0
        %v2744 = vpop.f32.mrf.mxu0
        %v2745 = vadd.f32 %v2580, %v2744
        %v2746 = vpop.f32.mrf.mxu0
        %2747 = vmatprep.mubr.bf16.mxu0 0
        %2748 = vmatmul.mubr.bf16.gmra.mxu0 %v2633
        %v2749 = vpop.f32.mrf.mxu0
        %v2750 = vadd.f32 %v2581, %v2749
        %v2751 = vpop.f32.mrf.mxu0
        %v2752 = vpop.f32.mrf.mxu0
        %v2753 = vadd.f32 %v2582, %v2752
        %v2754 = vpop.f32.mrf.mxu0
        %2755 = vmatprep.mubr.bf16.mxu0 0
        %2756 = vmatmul.mubr.bf16.gmra.mxu0 %v2636
        %v2757 = vpop.f32.mrf.mxu0
        %v2758 = vadd.f32 %v2583, %v2757
        %v2759 = vpop.f32.mrf.mxu0
        %v2760 = vpop.f32.mrf.mxu0
        %v2761 = vadd.f32 %v2584, %v2760
        %v2762 = vpop.f32.mrf.mxu0
        %2763 = vmatprep.mubr.bf16.mxu0 0
        %2764 = vmatmul.mubr.bf16.gmra.mxu0 %v2639
        %v2765 = vpop.f32.mrf.mxu0
        %v2766 = vadd.f32 %v2585, %v2765
        %v2767 = vpop.f32.mrf.mxu0
        %v2768 = vpop.f32.mrf.mxu0
        %v2769 = vadd.f32 %v2586, %v2768
        %v2770 = vpop.f32.mrf.mxu0
        %2771 = vmatprep.mubr.bf16.mxu0 0
        %2772 = vmatmul.mubr.bf16.gmra.mxu0 %v2642
        %v2773 = vpop.f32.mrf.mxu0
        %v2774 = vadd.f32 %v2587, %v2773
        %v2775 = vpop.f32.mrf.mxu0
        %v2776 = vpop.f32.mrf.mxu0
        %v2777 = vadd.f32 %v2588, %v2776
        %v2778 = vpop.f32.mrf.mxu0
        %2779 = vmatprep.mubr.bf16.mxu0 0
        %2780 = vmatmul.mubr.bf16.gmra.mxu0 %v2645
        %v2781 = vpop.f32.mrf.mxu0
        %v2782 = vadd.f32 %v2589, %v2781
        %v2783 = vpop.f32.mrf.mxu0
        %v2784 = vpop.f32.mrf.mxu0
        %v2785 = vadd.f32 %v2590, %v2784
        %v2786 = vpop.f32.mrf.mxu0
        %2787 = vmatprep.mubr.bf16.mxu0 0
        %2788 = vmatmul.mubr.bf16.gmra.mxu0 %v2648
        %v2789 = vpop.f32.mrf.mxu0
        %v2790 = vadd.f32 %v2591, %v2789
        %v2791 = vpop.f32.mrf.mxu0
        %v2792 = vpop.f32.mrf.mxu0
        %v2793 = vadd.f32 %v2592, %v2792
        %v2794 = vpop.f32.mrf.mxu0
        %2795 = vmatprep.mubr.bf16.mxu0 0
        %2796 = vmatmul.mubr.bf16.gmra.mxu0 %v2651
        %v2797 = vpop.f32.mrf.mxu0
        %v2798 = vadd.f32 %v2593, %v2797
        %v2799 = vpop.f32.mrf.mxu0
        %v2800 = vpop.f32.mrf.mxu0
        %v2801 = vadd.f32 %v2594, %v2800
        %v2802 = vpop.f32.mrf.mxu0
        %2803 = vmatprep.mubr.bf16.mxu0 0
        %2804 = vmatmul.mubr.bf16.gmra.mxu0 %v2654
        %v2805 = vpop.f32.mrf.mxu0
        %v2806 = vadd.f32 %v2595, %v2805
        %v2807 = vpop.f32.mrf.mxu0
        %v2808 = vpop.f32.mrf.mxu0
        %v2809 = vadd.f32 %v2596, %v2808
        %v2810 = vpop.f32.mrf.mxu0
        %2811 = vmatprep.mubr.bf16.mxu0 0
        %2812 = vmatmul.mubr.bf16.gmra.mxu0 %v2657
        %v2813 = vpop.f32.mrf.mxu0
        %v2814 = vadd.f32 %v2597, %v2813
        %v2815 = vpop.f32.mrf.mxu0
        %v2816 = vpop.f32.mrf.mxu0
        %v2817 = vadd.f32 %v2598, %v2816
        %v2818 = vpop.f32.mrf.mxu0
        %2819 = vdwg.mxu0
        %v2820 = vmax.f32 %v2694, 0.0
        %v2821 = vmax.f32 %v2697, 0.0
        %v2822 = vmax.f32 %v2702, 0.0
        %v2823 = vmax.f32 %v2705, 0.0
        %v2824 = vmax.f32 %v2710, 0.0
        %v2825 = vmax.f32 %v2713, 0.0
        %v2826 = vmax.f32 %v2718, 0.0
        %v2827 = vmax.f32 %v2721, 0.0
        %v2828 = vmax.f32 %v2726, 0.0
        %v2829 = vmax.f32 %v2729, 0.0
        %v2830 = vmax.f32 %v2734, 0.0
        %v2831 = vmax.f32 %v2737, 0.0
        %v2832 = vmax.f32 %v2742, 0.0
        %v2833 = vmax.f32 %v2745, 0.0
        %v2834 = vmax.f32 %v2750, 0.0
        %v2835 = vmax.f32 %v2753, 0.0
        %v2836 = vmax.f32 %v2758, 0.0
        %v2837 = vmax.f32 %v2761, 0.0
        %v2838 = vmax.f32 %v2766, 0.0
        %v2839 = vmax.f32 %v2769, 0.0
        %v2840 = vmax.f32 %v2774, 0.0
        %v2841 = vmax.f32 %v2777, 0.0
        %v2842 = vmax.f32 %v2782, 0.0
        %v2843 = vmax.f32 %v2785, 0.0
        %v2844 = vmax.f32 %v2790, 0.0
        %v2845 = vmax.f32 %v2793, 0.0
        %v2846 = vmax.f32 %v2798, 0.0
        %v2847 = vmax.f32 %v2801, 0.0
        %v2848 = vmax.f32 %v2806, 0.0
        %v2849 = vmax.f32 %v2809, 0.0
        %v2850 = vmax.f32 %v2814, 0.0
        %v2851 = vmax.f32 %v2817, 0.0
        %v2852 = vpack.c.bf16 %v2821, %v2820
        %v2853 = vpack.c.bf16 %v2823, %v2822
        %v2854 = vpack.c.bf16 %v2825, %v2824
        %v2855 = vpack.c.bf16 %v2827, %v2826
        %v2856 = vpack.c.bf16 %v2829, %v2828
        %v2857 = vpack.c.bf16 %v2831, %v2830
        %v2858 = vpack.c.bf16 %v2833, %v2832
        %v2859 = vpack.c.bf16 %v2835, %v2834
        %v2860 = vpack.c.bf16 %v2837, %v2836
        %v2861 = vpack.c.bf16 %v2839, %v2838
        %v2862 = vpack.c.bf16 %v2841, %v2840
        %v2863 = vpack.c.bf16 %v2843, %v2842
        %v2864 = vpack.c.bf16 %v2845, %v2844
        %v2865 = vpack.c.bf16 %v2847, %v2846
        %v2866 = vpack.c.bf16 %v2849, %v2848
        %v2867 = vpack.c.bf16 %v2851, %v2850
        %v2884 = vunpack.c.l.b16 %v2852
        %v2885 = vunpack.c.h.b16 %v2852
        %v2886 = vunpack.c.l.b16 %v2853
        %v2887 = vunpack.c.h.b16 %v2853
        %v2888 = vunpack.c.l.b16 %v2854
        %v2889 = vunpack.c.h.b16 %v2854
        %v2890 = vunpack.c.l.b16 %v2855
        %v2891 = vunpack.c.h.b16 %v2855
        %v2892 = vunpack.c.l.b16 %v2856
        %v2893 = vunpack.c.h.b16 %v2856
        %v2894 = vunpack.c.l.b16 %v2857
        %v2895 = vunpack.c.h.b16 %v2857
        %v2896 = vunpack.c.l.b16 %v2858
        %v2897 = vunpack.c.h.b16 %v2858
        %v2898 = vunpack.c.l.b16 %v2859
        %v2899 = vunpack.c.h.b16 %v2859
        %v2900 = vunpack.c.l.b16 %v2860
        %v2901 = vunpack.c.h.b16 %v2860
        %v2902 = vunpack.c.l.b16 %v2861
        %v2903 = vunpack.c.h.b16 %v2861
        %v2904 = vunpack.c.l.b16 %v2862
        %v2905 = vunpack.c.h.b16 %v2862
        %v2906 = vunpack.c.l.b16 %v2863
        %v2907 = vunpack.c.h.b16 %v2863
        %v2908 = vunpack.c.l.b16 %v2864
        %v2909 = vunpack.c.h.b16 %v2864
        %v2910 = vunpack.c.l.b16 %v2865
        %v2911 = vunpack.c.h.b16 %v2865
        %v2912 = vunpack.c.l.b16 %v2866
        %v2913 = vunpack.c.h.b16 %v2866
        %v2914 = vunpack.c.l.b16 %v2867
        %v2915 = vunpack.c.h.b16 %v2867
        %v2916 = vpack.c.b16 %v2884, %v2884
        %v2917 = vpack.c.b16 %v2885, %v2885
        %v2918 = vpack.c.b16 %v2886, %v2886
        %v2919 = vpack.c.b16 %v2887, %v2887
        %v2920 = vpack.c.b16 %v2888, %v2888
        %v2921 = vpack.c.b16 %v2889, %v2889
        %v2922 = vpack.c.b16 %v2890, %v2890
        %v2923 = vpack.c.b16 %v2891, %v2891
        %v2924 = vpack.c.b16 %v2892, %v2892
        %v2925 = vpack.c.b16 %v2893, %v2893
        %v2926 = vpack.c.b16 %v2894, %v2894
        %v2927 = vpack.c.b16 %v2895, %v2895
        %v2928 = vpack.c.b16 %v2896, %v2896
        %v2929 = vpack.c.b16 %v2897, %v2897
        %v2930 = vpack.c.b16 %v2898, %v2898
        %v2931 = vpack.c.b16 %v2899, %v2899
        %v2932 = vpack.c.b16 %v2900, %v2900
        %v2933 = vpack.c.b16 %v2901, %v2901
        %v2934 = vpack.c.b16 %v2902, %v2902
        %v2935 = vpack.c.b16 %v2903, %v2903
        %v2936 = vpack.c.b16 %v2904, %v2904
        %v2937 = vpack.c.b16 %v2905, %v2905
        %v2938 = vpack.c.b16 %v2906, %v2906
        %v2939 = vpack.c.b16 %v2907, %v2907
        %v2940 = vpack.c.b16 %v2908, %v2908
        %v2941 = vpack.c.b16 %v2909, %v2909
        %v2942 = vpack.c.b16 %v2910, %v2910
        %v2943 = vpack.c.b16 %v2911, %v2911
        %v2944 = vpack.c.b16 %v2912, %v2912
        %v2945 = vpack.c.b16 %v2913, %v2913
        %v2946 = vpack.c.b16 %v2914, %v2914
        %v2947 = vpack.c.b16 %v2915, %v2915
        %2980 = vst [vmem:[%s190] sm:$0xf] %v2916
        %2981 = vst [vmem:[%s190 + $0x4] sm:$0xf] %v2917
        %2982 = vst [vmem:[%s190 + $0x8] sm:$0xf] %v2918
        %2983 = vst [vmem:[%s190 + $0xc] sm:$0xf] %v2919
        %2984 = vst [vmem:[%s190 + $0x10] sm:$0xf] %v2920
        %2985 = vst [vmem:[%s190 + $0x14] sm:$0xf] %v2921
        %2986 = vst [vmem:[%s190 + $0x18] sm:$0xf] %v2922
        %2987 = vst [vmem:[%s190 + $0x1c] sm:$0xf] %v2923
        %2988 = vst [vmem:[%s190 + $0x20] sm:$0xf] %v2924
        %2989 = vst [vmem:[%s190 + $0x24] sm:$0xf] %v2925
        %2990 = vst [vmem:[%s190 + $0x28] sm:$0xf] %v2926
        %2991 = vst [vmem:[%s190 + $0x2c] sm:$0xf] %v2927
        %2992 = vst [vmem:[%s190 + $0x30] sm:$0xf] %v2928
        %2993 = vst [vmem:[%s190 + $0x34] sm:$0xf] %v2929
        %2994 = vst [vmem:[%s190 + $0x38] sm:$0xf] %v2930
        %2995 = vst [vmem:[%s190 + $0x3c] sm:$0xf] %v2931
        %2996 = vst [vmem:[%s190 + $0x40] sm:$0xf] %v2932
        %2997 = vst [vmem:[%s190 + $0x44] sm:$0xf] %v2933
        %2998 = vst [vmem:[%s190 + $0x48] sm:$0xf] %v2934
        %2999 = vst [vmem:[%s190 + $0x4c] sm:$0xf] %v2935
        %3000 = vst [vmem:[%s190 + $0x50] sm:$0xf] %v2936
        %3001 = vst [vmem:[%s190 + $0x54] sm:$0xf] %v2937
        %3002 = vst [vmem:[%s190 + $0x58] sm:$0xf] %v2938
        %3003 = vst [vmem:[%s190 + $0x5c] sm:$0xf] %v2939
        %3004 = vst [vmem:[%s190 + $0x60] sm:$0xf] %v2940
        %3005 = vst [vmem:[%s190 + $0x64] sm:$0xf] %v2941
        %3006 = vst [vmem:[%s190 + $0x68] sm:$0xf] %v2942
        %3007 = vst [vmem:[%s190 + $0x6c] sm:$0xf] %v2943
        %3008 = vst [vmem:[%s190 + $0x70] sm:$0xf] %v2944
        %3009 = vst [vmem:[%s190 + $0x74] sm:$0xf] %v2945
        %3010 = vst [vmem:[%s190 + $0x78] sm:$0xf] %v2946
        %3011 = vst [vmem:[%s190 + $0x7c] sm:$0xf] %v2947
        %s3012 = sand.u32 %s115, 1
        %s3013 = scalar_lea.sflag [#allocation4], %s3012
        %s3014 = sand.u32 %s115, 1
        %s3015 = smul.addr %s3014, 128
        %s3016 = scalar_lea.vmem [#allocation3], %s3015
        // Predicated region
        $region37: #{bottleneck_forward.1} parent=35 // pred_check
          %p3017 = pneg %p125
        $region38: #{bottleneck_forward.1} parent=35 // pred_check_branch
          %3019 = sbr.rel (%p3017) target = $region40
        $region39: #{bottleneck_forward.1} parent=35 // pred_region
          %s3021 = ssub.s32 2048, 2048
          %3022 = vsyncadd %s3013, %s3021
          %s3023 = smul.addr %s18, 32
          %s3024 = smul.addr %s3023, 64
          %s3025 = scalar_lea.hbm %s4, %s3024
          %s3026 = sshll.u32 %s3016, 4
          %s3027 = int_to_ptr.vmem [resolvable:$true] %s3026
          %3032 = dma.vmem_to_hbm [thread:$0]  %s3027, 2048, %s3025, %s3013, 64, 64, 4
        $region40: #{bottleneck_forward.1} parent=35 // pred_fallthru
          _
      $region36: #{bottleneck_forward.1} parent=5 // pred_fallthru
        _
      %p3033 = scmp.le.s32.totalorder 2, %s13
      // Predicated region
      $region41: #{bottleneck_forward.1} parent=5 // pred_check
        %p3034 = pneg %p3033
      $region42: #{bottleneck_forward.1} parent=5 // pred_check_branch
        %3036 = sbr.rel (%p3034) target = $region44
      $region43: #{bottleneck_forward.1} parent=5 // pred_region
        %s3037 = ssub.s32 %s13, 2
        // Predicated region
        $region45: #{bottleneck_forward.1} parent=43 // pred_check
          %p3038 = pneg %p131
        $region46: #{bottleneck_forward.1} parent=43 // pred_check_branch
          %3040 = sbr.rel (%p3038) target = $region48
        $region47: #{bottleneck_forward.1} parent=43 // pred_region
          %s3041 = sand.u32 %s116, 1
          %s3042 = scalar_lea.sflag [#allocation4], %s3041
          %s3043 = sand.u32 %s116, 1
          %s3044 = smul.addr %s3043, 128
          %s3045 = scalar_lea.vmem [#allocation3], %s3044
          %3046 = dma.done %s3042, 2048
        $region48: #{bottleneck_forward.1} parent=43 // pred_fallthru
          _
      $region44: #{bottleneck_forward.1} parent=5 // pred_fallthru
        _
    $region6: #{bottleneck_forward.1} parent=1 // loop_footer
      %s17 = sadd.s32 1, %s13
    $region7: #{bottleneck_forward.1} parent=1 // loop_footer_branch
      %12 = sbr.rel target = $region3
    $region8: #{bottleneck_forward.1} parent=1 // loop_exit
      _
    %3047 = vsyncpa [#allocation4], 1
    %s3048 = scalar_lea.sflag [#allocation4], 1
    %3049 = vsyncpa %s3048, 1

</llo_original>
